<compile_context>
chip_gen: v5e
topology: v5e:2x2
jax: 0.10.0
libtpu: 0.0.40
codegen_flags: <defaults>
</compile_context>

<pallas_src>
import functools

import jax
import jax.numpy as jnp
from jax.experimental import pallas as pl
from jax.experimental.pallas import tpu as pltpu

EPS_BN = 1e-5
EPS_COS = 1e-8


def _mm(a, b):
    """bf16-in / f32-accumulate MXU matmul."""
    return jnp.dot(a.astype(jnp.bfloat16), b.astype(jnp.bfloat16),
                   preferred_element_type=jnp.float32)


def _bn_train_t(x, gamma=None, beta=None):
    """BatchNorm1d, training mode, transposed orientation: x is (F, B).

    Statistics are per feature (per row), reduced over the batch (lane axis),
    biased variance, eps=1e-5 - identical to PyTorch's training-mode forward.
    """
    mean = jnp.mean(x, axis=1, keepdims=True)
    var = jnp.mean(jnp.square(x - mean), axis=1, keepdims=True)
    xhat = (x - mean) * jax.lax.rsqrt(var + EPS_BN)
    if gamma is not None:
        xhat = xhat * gamma + beta
    return xhat


def _cosine_cols(a, b):
    """nn.CosineSimilarity(dim=1) on (F, B)-oriented activations, per column.

    num * rsqrt(max(ssa*ssb, eps^2)) == num / max(||a||*||b||, eps); rsqrt goes
    to the EUP slot instead of two sqrts plus a VPU divide.
    """
    num = jnp.sum(a * b, axis=0, keepdims=True)
    ssa = jnp.sum(a * a, axis=0, keepdims=True)
    ssb = jnp.sum(b * b, axis=0, keepdims=True)
    return num * jax.lax.rsqrt(jnp.maximum(ssa * ssb, EPS_COS * EPS_COS))


# ----------------------------------------------------------------------------
# Kernel: grid over batch; per-step encoder + pooling accumulate, tail on last.
# ----------------------------------------------------------------------------
def _simsiam_kernel(P, D, B, inv_sd, inv_sp,
                    depth_ref, points_ref,
                    wdT_ref, wpT_ref,
                    w1T_ref, w2T_ref, w3T_ref, q1T_ref, q2T_ref, bn_ref,
                    loss_ref, z0_ref):
    b = pl.program_id(0)

    # ---- encoder stubs (one sample), channels-major / lane-dense -------------
    xd = depth_ref[0]                                   # (C, S_d) bf16
    xp = points_ref[0]                                  # (3, S_p) bf16
    # Encoder weights are embedded into disjoint halves of a 2P-wide feature
    # space ([Wd; 0] and [0; Wp] along the output-feature rows), so both
    # branches share all downstream matmuls without in-kernel concatenation.
    hd = jnp.maximum(_mm(wdT_ref[...], xd), 0.0)        # (2P, S_d) f32, transient
    hp = jnp.maximum(_mm(wpT_ref[...], xp), 0.0)        # (2P, S_p) f32, transient

    # ---- global_features: per-sample mean pooling (lane reduce, no matmul) ---
    pooled = (jnp.sum(hd, axis=1, keepdims=True) * inv_sd +
              jnp.sum(hp, axis=1, keepdims=True) * inv_sp)          # (2P, 1) f32

    @pl.when(b == 0)
    def _():
        z0_ref[...] = jnp.zeros_like(z0_ref)

    # Scatter this sample's pooled features into column b (one-hot outer
    # product: pure VPU, no dynamic lane indexing, no transposes).
    onehot = (jax.lax.broadcasted_iota(jnp.int32, (1, B), 1) == b
              ).astype(jnp.float32)                                  # (1, B)
    z0_ref[...] += pooled * onehot                                   # (2P, B)

    # ---- projectors + predictors + loss: once, on the last grid step ---------
    @pl.when(b == pl.num_programs(0) - 1)
    def _():
        bn = bn_ref[...]                                 # (max(2P,2D), 8) f32
        g1, b1 = bn[:2 * P, 0:1], bn[:2 * P, 1:2]
        g2, b2 = bn[:2 * P, 2:3], bn[:2 * P, 3:4]
        qg, qb = bn[:2 * P, 4:5], bn[:2 * P, 5:6]
        qbias = bn[:2 * D, 6:7]

        # Transposed orientation throughout: activations are (features, B),
        # weights are PyTorch (out_features, in_features).  Both projectors /
        # predictors run at once via block-diagonal weights.
        z0 = z0_ref[...]                                                 # (2P, B)
        h = jnp.maximum(_bn_train_t(_mm(w1T_ref[...], z0), g1, b1), 0.0)  # (2P, B)
        h = jnp.maximum(_bn_train_t(_mm(w2T_ref[...], h), g2, b2), 0.0)   # (2P, B)
        z = _bn_train_t(_mm(w3T_ref[...], h))                             # (2D, B)
        q = jnp.maximum(_bn_train_t(_mm(q1T_ref[...], z), qg, qb), 0.0)   # (2P, B)
        p = _mm(q2T_ref[...], q) + qbias                                  # (2D, B)

        zd, zp = z[:D, :], z[D:, :]
        pd, pp = p[:D, :], p[D:, :]

        # .detach() only affects gradients; the forward value is identical.
        # Sign matches the reference: 0.5 * (cos(pd, zp).mean() + cos(pp, zd).mean()).
        loss = 0.5 * (jnp.mean(_cosine_cols(pd, zp)) +
                      jnp.mean(_cosine_cols(pp, zd)))
        loss_ref[0, 0] = loss


@jax.jit
def simsiam_forward(depth, points, params):
    """depth: [B, C, H, W] (NCHW), points: [B, 3, N] -> (1, 1) SimSiam loss."""
    B, C, H, W = depth.shape
    _, CP, N = points.shape
    S_d, S_p = H * W, N
    P = params["w1T"].shape[0] // 2       # pred_dim
    D = params["w3T"].shape[0] // 2       # dim

    # Channels-major, lane-dense inputs: zero-copy reshapes of the native
    # channels-first tensors, cast to bf16 once (halves HBM->VMEM DMA bytes).
    depth_in = depth.reshape(B, C, S_d).astype(jnp.bfloat16)     # (B, C, S_d)
    points_in = points.astype(jnp.bfloat16)                       # (B, 3, S_p)

    kernel = functools.partial(_simsiam_kernel, P, D, B, 1.0 / S_d, 1.0 / S_p)
    vmem_full = pl.BlockSpec(memory_space=pltpu.MemorySpace.VMEM)  # resident weights

    return pl.pallas_call(
        kernel,
        out_shape=jax.ShapeDtypeStruct((1, 1), jnp.float32),
        grid=(B,),
        in_specs=[
            pl.BlockSpec((1, C, S_d), lambda b: (b, 0, 0)),   # one sample / step
            pl.BlockSpec((1, CP, S_p), lambda b: (b, 0, 0)),  # one sample / step
            vmem_full,  # w_enc_dT
            vmem_full,  # w_enc_pT
            vmem_full,  # w1T
            vmem_full,  # w2T
            vmem_full,  # w3T
            vmem_full,  # q1T
            vmem_full,  # q2T
            vmem_full,  # bn_pack
        ],
        out_specs=pl.BlockSpec(memory_space=pltpu.MemorySpace.SMEM),
        scratch_shapes=[pltpu.VMEM((2 * P, B), jnp.float32)],  # pooled features
        compiler_params=pltpu.CompilerParams(
            # Batch axis carries the pooled-feature accumulator and the tail
            # dependency -> it is a reduction axis ("arbitrary").
            dimension_semantics=("arbitrary",),
            # Explicit scoped-VMEM budget (raises the 16 MiB v5e default, stays
            # well under v7x's 64 MiB physical VMEM).
            vmem_limit_bytes=32 * 1024 * 1024,
        ),
    )(depth_in, points_in,
      params["w_enc_dT"], params["w_enc_pT"],
      params["w1T"], params["w2T"], params["w3T"],
      params["q1T"], params["q2T"], params["bn_pack"])


# ----------------------------------------------------------------------------
# Deterministic parameter init (PyTorch (out,in) layout, synthetic, pre-packed)
# ----------------------------------------------------------------------------
def _linear_w(key, fout, fin):
    return (jax.random.normal(key, (fout, fin), jnp.float32)
            * (1.0 / jnp.sqrt(jnp.float32(fin))))


def _block_diag(a, b):
    m1, n1 = a.shape
    m2, n2 = b.shape
    top = jnp.concatenate([a, jnp.zeros((m1, n2), a.dtype)], axis=1)
    bot = jnp.concatenate([jnp.zeros((m2, n1), b.dtype), b], axis=1)
    return jnp.concatenate([top, bot], axis=0)


def init_simsiam_params(key, pred_dim, dim, c_depth, c_points):
    P, D = pred_dim, dim
    ks = jax.random.split(key, 12)
    bf16 = jnp.bfloat16

    # Encoder stubs, embedded in disjoint halves of the 2P-wide feature space
    # (depth branch -> features [0, P), points branch -> features [P, 2P)).
    w_enc_dT = jnp.concatenate(
        [_linear_w(ks[0], P, c_depth), jnp.zeros((P, c_depth), jnp.float32)], axis=0)
    w_enc_pT = jnp.concatenate(
        [jnp.zeros((P, c_points), jnp.float32), _linear_w(ks[1], P, c_points)], axis=0)

    # NOTE: block-diagonal branch packing is the right call while 2P <= 256
    # (demo dims); at production P=256 / D=1024 run the branches as separate
    # N=P matmuls instead of shipping the structural zero blocks.
    params = {
        "w_enc_dT": w_enc_dT.astype(bf16),                                      # (2P, C)
        "w_enc_pT": w_enc_pT.astype(bf16),                                      # (2P, 3)
        # projector_d / projector_p fused block-diagonally, PyTorch (out, in) layout.
        "w1T": _block_diag(_linear_w(ks[2], P, P), _linear_w(ks[3], P, P)).astype(bf16),
        "w2T": _block_diag(_linear_w(ks[4], P, P), _linear_w(ks[5], P, P)).astype(bf16),
        "w3T": _block_diag(_linear_w(ks[6], D, P), _linear_w(ks[7], D, P)).astype(bf16),
        # predictor_d / predictor_p fused block-diagonally.
        "q1T": _block_diag(_linear_w(ks[8], P, D), _linear_w(ks[9], P, D)).astype(bf16),
        "q2T": _block_diag(_linear_w(ks[10], D, P), _linear_w(ks[11], D, P)).astype(bf16),
    }

    # Packed BN gammas/betas + final predictor bias, feature-major columns so no
    # in-kernel transpose is needed (robust to any P vs D ordering):
    #   col 0/1: projector BN1 gamma/beta   col 2/3: projector BN2 gamma/beta
    #   col 4/5: predictor BN gamma/beta    col 6  : predictor final Linear bias
    rows = max(2 * P, 2 * D, 8)
    bn = jnp.zeros((rows, 8), jnp.float32)
    bn = bn.at[:2 * P, 0].set(1.0)   # PyTorch BN default gamma=1 (betas stay 0)
    bn = bn.at[:2 * P, 2].set(1.0)
    bn = bn.at[:2 * P, 4].set(1.0)
    params["bn_pack"] = bn            # col 6 bias kept at 0 (synthetic, deterministic)
    return params


# ----------------------------------------------------------------------------
if __name__ == "__main__":
    key = jax.random.PRNGKey(0)
    kd, kp, kparams = jax.random.split(key, 3)

    # Small shapes consistent with the module (scaled-down dim / pred_dim).
    B, C, H, W = 4, 4, 16, 16        # depth: NCHW
    NPTS = 128                        # points: [B, 3, N]
    PRED_DIM, DIM = 32, 64            # stand-ins for 256 / 1024

    depth = jax.random.normal(kd, (B, C, H, W), jnp.float32)
    points = jax.random.normal(kp, (B, 3, NPTS), jnp.float32)

    params = init_simsiam_params(kparams, PRED_DIM, DIM, C, 3)

    loss = simsiam_forward(depth, points, params)
    loss = jax.block_until_ready(loss)
    assert loss.shape == (1, 1) and bool(jnp.isfinite(loss).all())
    print("KERNEL_OK")
</pallas_src>

<mosaic_0001>
module attributes {stable_mosaic.version = 11 : i64} {
  func.func @_simsiam_kernel(%arg0: i32, %arg1: memref<1x4x256xbf16, #tpu.memory_space<vmem>>, %arg2: memref<1x3x128xbf16, #tpu.memory_space<vmem>>, %arg3: memref<64x4xbf16, #tpu.memory_space<vmem>>, %arg4: memref<64x3xbf16, #tpu.memory_space<vmem>>, %arg5: memref<64x64xbf16, #tpu.memory_space<vmem>>, %arg6: memref<64x64xbf16, #tpu.memory_space<vmem>>, %arg7: memref<128x64xbf16, #tpu.memory_space<vmem>>, %arg8: memref<64x128xbf16, #tpu.memory_space<vmem>>, %arg9: memref<128x64xbf16, #tpu.memory_space<vmem>>, %arg10: memref<128x8xf32, #tpu.memory_space<vmem>>, %arg11: memref<1x1xf32, #tpu.memory_space<smem>>, %arg12: memref<64x4xf32, #tpu.memory_space<vmem>>) attributes {dimension_semantics = [#tpu.dimension_semantics<arbitrary>], iteration_bounds = array<i64: 4>, scalar_prefetch = 0 : i64, scratch_operands = 1 : i64, tpu.core_type = #tpu.core_type<tc>, window_params = [{transform_indices = @transform_0, window_bounds = array<i64: 1, 4, 256>}, {transform_indices = @transform_1, window_bounds = array<i64: 1, 3, 128>}, {pipeline_mode = #tpu.pipeline_mode<synchronous>, transform_indices = @transform_2, window_bounds = array<i64: 64, 4>}, {pipeline_mode = #tpu.pipeline_mode<synchronous>, transform_indices = @transform_3, window_bounds = array<i64: 64, 3>}, {pipeline_mode = #tpu.pipeline_mode<synchronous>, transform_indices = @transform_4, window_bounds = array<i64: 64, 64>}, {pipeline_mode = #tpu.pipeline_mode<synchronous>, transform_indices = @transform_5, window_bounds = array<i64: 64, 64>}, {pipeline_mode = #tpu.pipeline_mode<synchronous>, transform_indices = @transform_6, window_bounds = array<i64: 128, 64>}, {pipeline_mode = #tpu.pipeline_mode<synchronous>, transform_indices = @transform_7, window_bounds = array<i64: 64, 128>}, {pipeline_mode = #tpu.pipeline_mode<synchronous>, transform_indices = @transform_8, window_bounds = array<i64: 128, 64>}, {pipeline_mode = #tpu.pipeline_mode<synchronous>, transform_indices = @transform_9, window_bounds = array<i64: 128, 8>}, {transform_indices = @transform_10, window_bounds = array<i64: 1, 1>}]} {
    %c0 = arith.constant 0 : index
    %c0_0 = arith.constant 0 : index
    %c0_1 = arith.constant 0 : index
    %0 = vector.load %arg1[%c0, %c0_0, %c0_1] : memref<1x4x256xbf16, #tpu.memory_space<vmem>>, vector<1x4x256xbf16>
    %1 = vector.shape_cast %0 : vector<1x4x256xbf16> to vector<4x256xbf16>
    %c0_2 = arith.constant 0 : index
    %c0_3 = arith.constant 0 : index
    %c0_4 = arith.constant 0 : index
    %2 = vector.load %arg2[%c0_2, %c0_3, %c0_4] : memref<1x3x128xbf16, #tpu.memory_space<vmem>>, vector<1x3x128xbf16>
    %3 = vector.shape_cast %2 : vector<1x3x128xbf16> to vector<3x128xbf16>
    %c0_5 = arith.constant 0 : index
    %c0_6 = arith.constant 0 : index
    %4 = vector.load %arg3[%c0_5, %c0_6] : memref<64x4xbf16, #tpu.memory_space<vmem>>, vector<64x4xbf16>
    %cst = arith.constant dense<0.000000e+00> : vector<64x256xf32>
    %5 = tpu.matmul %4, %1, %cst {dimension_numbers = #tpu.dot_dimension_numbers<[1], [0], [0], [1], [0, 0, 1, 1], [], []>} : vector<64x4xbf16>, vector<4x256xbf16>, vector<64x256xf32> -> vector<64x256xf32>
    %cst_7 = arith.constant 0.000000e+00 : f32
    %6 = vector.broadcast %cst_7 : f32 to vector<64x256xf32>
    %7 = arith.maximumf %5, %6 : vector<64x256xf32>
    %c0_8 = arith.constant 0 : index
    %c0_9 = arith.constant 0 : index
    %8 = vector.load %arg4[%c0_8, %c0_9] : memref<64x3xbf16, #tpu.memory_space<vmem>>, vector<64x3xbf16>
    %cst_10 = arith.constant dense<0.000000e+00> : vector<64x128xf32>
    %9 = tpu.matmul %8, %3, %cst_10 {dimension_numbers = #tpu.dot_dimension_numbers<[1], [0], [0], [1], [0, 0, 1, 1], [], []>} : vector<64x3xbf16>, vector<3x128xbf16>, vector<64x128xf32> -> vector<64x128xf32>
    %cst_11 = arith.constant 0.000000e+00 : f32
    %10 = vector.broadcast %cst_11 : f32 to vector<64x128xf32>
    %11 = arith.maximumf %9, %10 : vector<64x128xf32>
    %cst_12 = arith.constant dense<0.000000e+00> : vector<64xf32>
    %12 = vector.multi_reduction <add>, %7, %cst_12 [1] : vector<64x256xf32> to vector<64xf32>
    %13 = vector.shape_cast %12 : vector<64xf32> to vector<64x1xf32>
    %cst_13 = arith.constant 3.906250e-03 : f32
    %14 = vector.broadcast %cst_13 : f32 to vector<64x1xf32>
    %15 = arith.mulf %13, %14 : vector<64x1xf32>
    %cst_14 = arith.constant dense<0.000000e+00> : vector<64xf32>
    %16 = vector.multi_reduction <add>, %11, %cst_14 [1] : vector<64x128xf32> to vector<64xf32>
    %17 = vector.shape_cast %16 : vector<64xf32> to vector<64x1xf32>
    %cst_15 = arith.constant 7.812500e-03 : f32
    %18 = vector.broadcast %cst_15 : f32 to vector<64x1xf32>
    %19 = arith.mulf %17, %18 : vector<64x1xf32>
    %20 = arith.addf %15, %19 : vector<64x1xf32>
    %c0_i32 = arith.constant 0 : i32
    %21 = arith.cmpi eq, %arg0, %c0_i32 : i32
    %22 = arith.extui %21 : i1 to i32
    %c0_i32_16 = arith.constant 0 : i32
    %23 = arith.cmpi ne, %22, %c0_i32_16 : i32
    scf.if %23 {
      %cst_22 = arith.constant 0.000000e+00 : f32
      %38 = vector.broadcast %cst_22 : f32 to vector<64x4xf32>
      %c0_23 = arith.constant 0 : index
      %c0_24 = arith.constant 0 : index
      %39 = vector.load %arg12[%c0_23, %c0_24] : memref<64x4xf32, #tpu.memory_space<vmem>>, vector<64x4xf32>
      tpu.vector_store %arg12[%c0_23, %c0_24], %38 {strides = array<i32>} : memref<64x4xf32, #tpu.memory_space<vmem>>, vector<64x4xf32>,
    } else {
    }
    %24 = tpu.iota {dimensions = array<i32: 1>} : vector<1x4xi32>
    %25 = vector.broadcast %arg0 : i32 to vector<1x4xi32>
    %26 = arith.cmpi eq, %24, %25 : vector<1x4xi32>
    %27 = arith.extui %26 : vector<1x4xi1> to vector<1x4xi32>
    %28 = arith.sitofp %27 : vector<1x4xi32> to vector<1x4xf32>
    %c0_17 = arith.constant 0 : index
    %c0_18 = arith.constant 0 : index
    %29 = vector.load %arg12[%c0_17, %c0_18] : memref<64x4xf32, #tpu.memory_space<vmem>>, vector<64x4xf32>
    %30 = vector.broadcast %20 : vector<64x1xf32> to vector<64x4xf32>
    %31 = vector.broadcast %28 : vector<1x4xf32> to vector<64x4xf32>
    %32 = arith.mulf %30, %31 : vector<64x4xf32>
    %33 = arith.addf %29, %32 : vector<64x4xf32>
    %c0_19 = arith.constant 0 : index
    %c0_20 = arith.constant 0 : index
    %34 = vector.load %arg12[%c0_19, %c0_20] : memref<64x4xf32, #tpu.memory_space<vmem>>, vector<64x4xf32>
    tpu.vector_store %arg12[%c0_19, %c0_20], %33 {strides = array<i32>} : memref<64x4xf32, #tpu.memory_space<vmem>>, vector<64x4xf32>,
    %c3_i32 = arith.constant 3 : i32
    %35 = arith.cmpi eq, %arg0, %c3_i32 : i32
    %36 = arith.extui %35 : i1 to i32
    %c0_i32_21 = arith.constant 0 : i32
    %37 = arith.cmpi ne, %36, %c0_i32_21 : i32
    scf.if %37 {
      %c0_22 = arith.constant 0 : index
      %c0_23 = arith.constant 0 : index
      %38 = vector.load %arg10[%c0_22, %c0_23] : memref<128x8xf32, #tpu.memory_space<vmem>>, vector<128x8xf32>
      %39 = vector.extract_strided_slice %38 {offsets = [0, 0], sizes = [64, 1], strides = [1, 1]} : vector<128x8xf32> to vector<64x1xf32>
      %40 = vector.extract_strided_slice %38 {offsets = [0, 1], sizes = [64, 1], strides = [1, 1]} : vector<128x8xf32> to vector<64x1xf32>
      %41 = vector.extract_strided_slice %38 {offsets = [0, 2], sizes = [64, 1], strides = [1, 1]} : vector<128x8xf32> to vector<64x1xf32>
      %42 = vector.extract_strided_slice %38 {offsets = [0, 3], sizes = [64, 1], strides = [1, 1]} : vector<128x8xf32> to vector<64x1xf32>
      %43 = vector.extract_strided_slice %38 {offsets = [0, 4], sizes = [64, 1], strides = [1, 1]} : vector<128x8xf32> to vector<64x1xf32>
      %44 = vector.extract_strided_slice %38 {offsets = [0, 5], sizes = [64, 1], strides = [1, 1]} : vector<128x8xf32> to vector<64x1xf32>
      %45 = vector.extract_strided_slice %38 {offsets = [0, 6], sizes = [128, 1], strides = [1, 1]} : vector<128x8xf32> to vector<128x1xf32>
      %c0_24 = arith.constant 0 : index
      %c0_25 = arith.constant 0 : index
      %46 = vector.load %arg12[%c0_24, %c0_25] : memref<64x4xf32, #tpu.memory_space<vmem>>, vector<64x4xf32>
      %c0_26 = arith.constant 0 : index
      %c0_27 = arith.constant 0 : index
      %47 = vector.load %arg5[%c0_26, %c0_27] : memref<64x64xbf16, #tpu.memory_space<vmem>>, vector<64x64xbf16>
      %48 = arith.truncf %46 : vector<64x4xf32> to vector<64x4xbf16>
      %cst_28 = arith.constant dense<0.000000e+00> : vector<64x4xf32>
      %49 = tpu.matmul %47, %48, %cst_28 {dimension_numbers = #tpu.dot_dimension_numbers<[1], [0], [0], [1], [0, 0, 1, 1], [], []>} : vector<64x64xbf16>, vector<64x4xbf16>, vector<64x4xf32> -> vector<64x4xf32>
      %cst_29 = arith.constant dense<0.000000e+00> : vector<64xf32>
      %50 = vector.multi_reduction <add>, %49, %cst_29 [1] : vector<64x4xf32> to vector<64xf32>
      %51 = vector.shape_cast %50 : vector<64xf32> to vector<64x1xf32>
      %cst_30 = arith.constant 4.000000e+00 : f32
      %52 = vector.broadcast %cst_30 : f32 to vector<64x1xf32>
      %53 = arith.divf %51, %52 : vector<64x1xf32>
      %54 = vector.broadcast %53 : vector<64x1xf32> to vector<64x4xf32>
      %55 = arith.subf %49, %54 : vector<64x4xf32>
      %56 = arith.mulf %55, %55 : vector<64x4xf32>
      %cst_31 = arith.constant dense<0.000000e+00> : vector<64xf32>
      %57 = vector.multi_reduction <add>, %56, %cst_31 [1] : vector<64x4xf32> to vector<64xf32>
      %58 = vector.shape_cast %57 : vector<64xf32> to vector<64x1xf32>
      %cst_32 = arith.constant 4.000000e+00 : f32
      %59 = vector.broadcast %cst_32 : f32 to vector<64x1xf32>
      %60 = arith.divf %58, %59 : vector<64x1xf32>
      %61 = vector.broadcast %53 : vector<64x1xf32> to vector<64x4xf32>
      %62 = arith.subf %49, %61 : vector<64x4xf32>
      %cst_33 = arith.constant 9.99999974E-6 : f32
      %63 = vector.broadcast %cst_33 : f32 to vector<64x1xf32>
      %64 = arith.addf %60, %63 : vector<64x1xf32>
      %65 = math.rsqrt %64 : vector<64x1xf32>
      %66 = vector.broadcast %65 : vector<64x1xf32> to vector<64x4xf32>
      %67 = arith.mulf %62, %66 : vector<64x4xf32>
      %68 = vector.broadcast %39 : vector<64x1xf32> to vector<64x4xf32>
      %69 = arith.mulf %67, %68 : vector<64x4xf32>
      %70 = vector.broadcast %40 : vector<64x1xf32> to vector<64x4xf32>
      %71 = arith.addf %69, %70 : vector<64x4xf32>
      %cst_34 = arith.constant 0.000000e+00 : f32
      %72 = vector.broadcast %cst_34 : f32 to vector<64x4xf32>
      %73 = arith.maximumf %71, %72 : vector<64x4xf32>
      %c0_35 = arith.constant 0 : index
      %c0_36 = arith.constant 0 : index
      %74 = vector.load %arg6[%c0_35, %c0_36] : memref<64x64xbf16, #tpu.memory_space<vmem>>, vector<64x64xbf16>
      %75 = arith.truncf %73 : vector<64x4xf32> to vector<64x4xbf16>
      %cst_37 = arith.constant dense<0.000000e+00> : vector<64x4xf32>
      %76 = tpu.matmul %74, %75, %cst_37 {dimension_numbers = #tpu.dot_dimension_numbers<[1], [0], [0], [1], [0, 0, 1, 1], [], []>} : vector<64x64xbf16>, vector<64x4xbf16>, vector<64x4xf32> -> vector<64x4xf32>
      %cst_38 = arith.constant dense<0.000000e+00> : vector<64xf32>
      %77 = vector.multi_reduction <add>, %76, %cst_38 [1] : vector<64x4xf32> to vector<64xf32>
      %78 = vector.shape_cast %77 : vector<64xf32> to vector<64x1xf32>
      %cst_39 = arith.constant 4.000000e+00 : f32
      %79 = vector.broadcast %cst_39 : f32 to vector<64x1xf32>
      %80 = arith.divf %78, %79 : vector<64x1xf32>
      %81 = vector.broadcast %80 : vector<64x1xf32> to vector<64x4xf32>
      %82 = arith.subf %76, %81 : vector<64x4xf32>
      %83 = arith.mulf %82, %82 : vector<64x4xf32>
      %cst_40 = arith.constant dense<0.000000e+00> : vector<64xf32>
      %84 = vector.multi_reduction <add>, %83, %cst_40 [1] : vector<64x4xf32> to vector<64xf32>
      %85 = vector.shape_cast %84 : vector<64xf32> to vector<64x1xf32>
      %cst_41 = arith.constant 4.000000e+00 : f32
      %86 = vector.broadcast %cst_41 : f32 to vector<64x1xf32>
      %87 = arith.divf %85, %86 : vector<64x1xf32>
      %88 = vector.broadcast %80 : vector<64x1xf32> to vector<64x4xf32>
      %89 = arith.subf %76, %88 : vector<64x4xf32>
      %cst_42 = arith.constant 9.99999974E-6 : f32
      %90 = vector.broadcast %cst_42 : f32 to vector<64x1xf32>
      %91 = arith.addf %87, %90 : vector<64x1xf32>
      %92 = math.rsqrt %91 : vector<64x1xf32>
      %93 = vector.broadcast %92 : vector<64x1xf32> to vector<64x4xf32>
      %94 = arith.mulf %89, %93 : vector<64x4xf32>
      %95 = vector.broadcast %41 : vector<64x1xf32> to vector<64x4xf32>
      %96 = arith.mulf %94, %95 : vector<64x4xf32>
      %97 = vector.broadcast %42 : vector<64x1xf32> to vector<64x4xf32>
      %98 = arith.addf %96, %97 : vector<64x4xf32>
      %cst_43 = arith.constant 0.000000e+00 : f32
      %99 = vector.broadcast %cst_43 : f32 to vector<64x4xf32>
      %100 = arith.maximumf %98, %99 : vector<64x4xf32>
      %c0_44 = arith.constant 0 : index
      %c0_45 = arith.constant 0 : index
      %101 = vector.load %arg7[%c0_44, %c0_45] : memref<128x64xbf16, #tpu.memory_space<vmem>>, vector<128x64xbf16>
      %102 = arith.truncf %100 : vector<64x4xf32> to vector<64x4xbf16>
      %cst_46 = arith.constant dense<0.000000e+00> : vector<128x4xf32>
      %103 = tpu.matmul %101, %102, %cst_46 {dimension_numbers = #tpu.dot_dimension_numbers<[1], [0], [0], [1], [0, 0, 1, 1], [], []>} : vector<128x64xbf16>, vector<64x4xbf16>, vector<128x4xf32> -> vector<128x4xf32>
      %cst_47 = arith.constant dense<0.000000e+00> : vector<128xf32>
      %104 = vector.multi_reduction <add>, %103, %cst_47 [1] : vector<128x4xf32> to vector<128xf32>
      %105 = vector.shape_cast %104 : vector<128xf32> to vector<128x1xf32>
      %cst_48 = arith.constant 4.000000e+00 : f32
      %106 = vector.broadcast %cst_48 : f32 to vector<128x1xf32>
      %107 = arith.divf %105, %106 : vector<128x1xf32>
      %108 = vector.broadcast %107 : vector<128x1xf32> to vector<128x4xf32>
      %109 = arith.subf %103, %108 : vector<128x4xf32>
      %110 = arith.mulf %109, %109 : vector<128x4xf32>
      %cst_49 = arith.constant dense<0.000000e+00> : vector<128xf32>
      %111 = vector.multi_reduction <add>, %110, %cst_49 [1] : vector<128x4xf32> to vector<128xf32>
      %112 = vector.shape_cast %111 : vector<128xf32> to vector<128x1xf32>
      %cst_50 = arith.constant 4.000000e+00 : f32
      %113 = vector.broadcast %cst_50 : f32 to vector<128x1xf32>
      %114 = arith.divf %112, %113 : vector<128x1xf32>
      %115 = vector.broadcast %107 : vector<128x1xf32> to vector<128x4xf32>
      %116 = arith.subf %103, %115 : vector<128x4xf32>
      %cst_51 = arith.constant 9.99999974E-6 : f32
      %117 = vector.broadcast %cst_51 : f32 to vector<128x1xf32>
      %118 = arith.addf %114, %117 : vector<128x1xf32>
      %119 = math.rsqrt %118 : vector<128x1xf32>
      %120 = vector.broadcast %119 : vector<128x1xf32> to vector<128x4xf32>
      %121 = arith.mulf %116, %120 : vector<128x4xf32>
      %c0_52 = arith.constant 0 : index
      %c0_53 = arith.constant 0 : index
      %122 = vector.load %arg8[%c0_52, %c0_53] : memref<64x128xbf16, #tpu.memory_space<vmem>>, vector<64x128xbf16>
      %123 = arith.truncf %121 : vector<128x4xf32> to vector<128x4xbf16>
      %cst_54 = arith.constant dense<0.000000e+00> : vector<64x4xf32>
      %124 = tpu.matmul %122, %123, %cst_54 {dimension_numbers = #tpu.dot_dimension_numbers<[1], [0], [0], [1], [0, 0, 1, 1], [], []>} : vector<64x128xbf16>, vector<128x4xbf16>, vector<64x4xf32> -> vector<64x4xf32>
      %cst_55 = arith.constant dense<0.000000e+00> : vector<64xf32>
      %125 = vector.multi_reduction <add>, %124, %cst_55 [1] : vector<64x4xf32> to vector<64xf32>
      %126 = vector.shape_cast %125 : vector<64xf32> to vector<64x1xf32>
      %cst_56 = arith.constant 4.000000e+00 : f32
      %127 = vector.broadcast %cst_56 : f32 to vector<64x1xf32>
      %128 = arith.divf %126, %127 : vector<64x1xf32>
      %129 = vector.broadcast %128 : vector<64x1xf32> to vector<64x4xf32>
      %130 = arith.subf %124, %129 : vector<64x4xf32>
      %131 = arith.mulf %130, %130 : vector<64x4xf32>
      %cst_57 = arith.constant dense<0.000000e+00> : vector<64xf32>
      %132 = vector.multi_reduction <add>, %131, %cst_57 [1] : vector<64x4xf32> to vector<64xf32>
      %133 = vector.shape_cast %132 : vector<64xf32> to vector<64x1xf32>
      %cst_58 = arith.constant 4.000000e+00 : f32
      %134 = vector.broadcast %cst_58 : f32 to vector<64x1xf32>
      %135 = arith.divf %133, %134 : vector<64x1xf32>
      %136 = vector.broadcast %128 : vector<64x1xf32> to vector<64x4xf32>
      %137 = arith.subf %124, %136 : vector<64x4xf32>
      %cst_59 = arith.constant 9.99999974E-6 : f32
      %138 = vector.broadcast %cst_59 : f32 to vector<64x1xf32>
      %139 = arith.addf %135, %138 : vector<64x1xf32>
      %140 = math.rsqrt %139 : vector<64x1xf32>
      %141 = vector.broadcast %140 : vector<64x1xf32> to vector<64x4xf32>
      %142 = arith.mulf %137, %141 : vector<64x4xf32>
      %143 = vector.broadcast %43 : vector<64x1xf32> to vector<64x4xf32>
      %144 = arith.mulf %142, %143 : vector<64x4xf32>
      %145 = vector.broadcast %44 : vector<64x1xf32> to vector<64x4xf32>
      %146 = arith.addf %144, %145 : vector<64x4xf32>
      %cst_60 = arith.constant 0.000000e+00 : f32
      %147 = vector.broadcast %cst_60 : f32 to vector<64x4xf32>
      %148 = arith.maximumf %146, %147 : vector<64x4xf32>
      %c0_61 = arith.constant 0 : index
      %c0_62 = arith.constant 0 : index
      %149 = vector.load %arg9[%c0_61, %c0_62] : memref<128x64xbf16, #tpu.memory_space<vmem>>, vector<128x64xbf16>
      %150 = arith.truncf %148 : vector<64x4xf32> to vector<64x4xbf16>
      %cst_63 = arith.constant dense<0.000000e+00> : vector<128x4xf32>
      %151 = tpu.matmul %149, %150, %cst_63 {dimension_numbers = #tpu.dot_dimension_numbers<[1], [0], [0], [1], [0, 0, 1, 1], [], []>} : vector<128x64xbf16>, vector<64x4xbf16>, vector<128x4xf32> -> vector<128x4xf32>
      %152 = vector.broadcast %45 : vector<128x1xf32> to vector<128x4xf32>
      %153 = arith.addf %151, %152 : vector<128x4xf32>
      %154 = vector.extract_strided_slice %121 {offsets = [0, 0], sizes = [64, 4], strides = [1, 1]} : vector<128x4xf32> to vector<64x4xf32>
      %155 = vector.extract_strided_slice %121 {offsets = [64, 0], sizes = [64, 4], strides = [1, 1]} : vector<128x4xf32> to vector<64x4xf32>
      %156 = vector.extract_strided_slice %153 {offsets = [0, 0], sizes = [64, 4], strides = [1, 1]} : vector<128x4xf32> to vector<64x4xf32>
      %157 = vector.extract_strided_slice %153 {offsets = [64, 0], sizes = [64, 4], strides = [1, 1]} : vector<128x4xf32> to vector<64x4xf32>
      %158 = arith.mulf %156, %155 : vector<64x4xf32>
      %cst_64 = arith.constant dense<0.000000e+00> : vector<4xf32>
      %159 = vector.multi_reduction <add>, %158, %cst_64 [0] : vector<64x4xf32> to vector<4xf32>
      %160 = vector.shape_cast %159 : vector<4xf32> to vector<1x4xf32>
      %161 = arith.mulf %156, %156 : vector<64x4xf32>
      %cst_65 = arith.constant dense<0.000000e+00> : vector<4xf32>
      %162 = vector.multi_reduction <add>, %161, %cst_65 [0] : vector<64x4xf32> to vector<4xf32>
      %163 = vector.shape_cast %162 : vector<4xf32> to vector<1x4xf32>
      %164 = arith.mulf %155, %155 : vector<64x4xf32>
      %cst_66 = arith.constant dense<0.000000e+00> : vector<4xf32>
      %165 = vector.multi_reduction <add>, %164, %cst_66 [0] : vector<64x4xf32> to vector<4xf32>
      %166 = vector.shape_cast %165 : vector<4xf32> to vector<1x4xf32>
      %167 = arith.mulf %163, %166 : vector<1x4xf32>
      %cst_67 = arith.constant 1.000000e-16 : f32
      %168 = vector.broadcast %cst_67 : f32 to vector<1x4xf32>
      %169 = arith.maximumf %167, %168 : vector<1x4xf32>
      %170 = math.rsqrt %169 : vector<1x4xf32>
      %171 = arith.mulf %160, %170 : vector<1x4xf32>
      %172 = vector.shape_cast %171 : vector<1x4xf32> to vector<1x1x4xf32>
      %cst_68 = arith.constant dense<0.000000e+00> : vector<1xf32>
      %173 = vector.multi_reduction <add>, %172, %cst_68 [1, 2] : vector<1x1x4xf32> to vector<1xf32>
      %174 = vector.shape_cast %173 : vector<1xf32> to vector<1x1x1xf32>
      %175 = vector.extract %174[0, 0, 0] : f32 from vector<1x1x1xf32>
      %cst_69 = arith.constant 4.000000e+00 : f32
      %176 = arith.divf %175, %cst_69 : f32
      %177 = arith.mulf %157, %154 : vector<64x4xf32>
      %cst_70 = arith.constant dense<0.000000e+00> : vector<4xf32>
      %178 = vector.multi_reduction <add>, %177, %cst_70 [0] : vector<64x4xf32> to vector<4xf32>
      %179 = vector.shape_cast %178 : vector<4xf32> to vector<1x4xf32>
      %180 = arith.mulf %157, %157 : vector<64x4xf32>
      %cst_71 = arith.constant dense<0.000000e+00> : vector<4xf32>
      %181 = vector.multi_reduction <add>, %180, %cst_71 [0] : vector<64x4xf32> to vector<4xf32>
      %182 = vector.shape_cast %181 : vector<4xf32> to vector<1x4xf32>
      %183 = arith.mulf %154, %154 : vector<64x4xf32>
      %cst_72 = arith.constant dense<0.000000e+00> : vector<4xf32>
      %184 = vector.multi_reduction <add>, %183, %cst_72 [0] : vector<64x4xf32> to vector<4xf32>
      %185 = vector.shape_cast %184 : vector<4xf32> to vector<1x4xf32>
      %186 = arith.mulf %182, %185 : vector<1x4xf32>
      %cst_73 = arith.constant 1.000000e-16 : f32
      %187 = vector.broadcast %cst_73 : f32 to vector<1x4xf32>
      %188 = arith.maximumf %186, %187 : vector<1x4xf32>
      %189 = math.rsqrt %188 : vector<1x4xf32>
      %190 = arith.mulf %179, %189 : vector<1x4xf32>
      %191 = vector.shape_cast %190 : vector<1x4xf32> to vector<1x1x4xf32>
      %cst_74 = arith.constant dense<0.000000e+00> : vector<1xf32>
      %192 = vector.multi_reduction <add>, %191, %cst_74 [1, 2] : vector<1x1x4xf32> to vector<1xf32>
      %193 = vector.shape_cast %192 : vector<1xf32> to vector<1x1x1xf32>
      %194 = vector.extract %193[0, 0, 0] : f32 from vector<1x1x1xf32>
      %cst_75 = arith.constant 4.000000e+00 : f32
      %195 = arith.divf %194, %cst_75 : f32
      %196 = arith.addf %176, %195 : f32
      %cst_76 = arith.constant 5.000000e-01 : f32
      %197 = arith.mulf %cst_76, %196 : f32
      %c0_77 = arith.constant 0 : index
      %c0_78 = arith.constant 0 : index
      %198 = memref.load %arg11[%c0_77, %c0_78] : memref<1x1xf32, #tpu.memory_space<smem>>
      memref.store %197, %arg11[%c0_77, %c0_78] : memref<1x1xf32, #tpu.memory_space<smem>>
    } else {
    }
    return
  }
  func.func @transform_0(%arg0: i32) -> (i32, i32, i32) {
    %c0_i32 = arith.constant 0 : i32
    %c0_i32_0 = arith.constant 0 : i32
    %c0_i32_1 = arith.constant 0 : i32
    return %arg0, %c0_i32, %c0_i32_0 : i32, i32, i32
  }
  func.func @transform_1(%arg0: i32) -> (i32, i32, i32) {
    %c0_i32 = arith.constant 0 : i32
    %c0_i32_0 = arith.constant 0 : i32
    %c0_i32_1 = arith.constant 0 : i32
    return %arg0, %c0_i32, %c0_i32_0 : i32, i32, i32
  }
  func.func @transform_2(%arg0: i32) -> (i32, i32) {
    %c0_i32 = arith.constant 0 : i32
    %c0_i32_0 = arith.constant 0 : i32
    %c0_i32_1 = arith.constant 0 : i32
    return %c0_i32, %c0_i32_0 : i32, i32
  }
  func.func @transform_3(%arg0: i32) -> (i32, i32) {
    %c0_i32 = arith.constant 0 : i32
    %c0_i32_0 = arith.constant 0 : i32
    %c0_i32_1 = arith.constant 0 : i32
    return %c0_i32, %c0_i32_0 : i32, i32
  }
  func.func @transform_4(%arg0: i32) -> (i32, i32) {
    %c0_i32 = arith.constant 0 : i32
    %c0_i32_0 = arith.constant 0 : i32
    %c0_i32_1 = arith.constant 0 : i32
    return %c0_i32, %c0_i32_0 : i32, i32
  }
  func.func @transform_5(%arg0: i32) -> (i32, i32) {
    %c0_i32 = arith.constant 0 : i32
    %c0_i32_0 = arith.constant 0 : i32
    %c0_i32_1 = arith.constant 0 : i32
    return %c0_i32, %c0_i32_0 : i32, i32
  }
  func.func @transform_6(%arg0: i32) -> (i32, i32) {
    %c0_i32 = arith.constant 0 : i32
    %c0_i32_0 = arith.constant 0 : i32
    %c0_i32_1 = arith.constant 0 : i32
    return %c0_i32, %c0_i32_0 : i32, i32
  }
  func.func @transform_7(%arg0: i32) -> (i32, i32) {
    %c0_i32 = arith.constant 0 : i32
    %c0_i32_0 = arith.constant 0 : i32
    %c0_i32_1 = arith.constant 0 : i32
    return %c0_i32, %c0_i32_0 : i32, i32
  }
  func.func @transform_8(%arg0: i32) -> (i32, i32) {
    %c0_i32 = arith.constant 0 : i32
    %c0_i32_0 = arith.constant 0 : i32
    %c0_i32_1 = arith.constant 0 : i32
    return %c0_i32, %c0_i32_0 : i32, i32
  }
  func.func @transform_9(%arg0: i32) -> (i32, i32) {
    %c0_i32 = arith.constant 0 : i32
    %c0_i32_0 = arith.constant 0 : i32
    %c0_i32_1 = arith.constant 0 : i32
    return %c0_i32, %c0_i32_0 : i32, i32
  }
  func.func @transform_10(%arg0: i32) -> (i32, i32) {
    %c0_i32 = arith.constant 0 : i32
    %c0_i32_0 = arith.constant 0 : i32
    %c0_i32_1 = arith.constant 0 : i32
    return %c0_i32, %c0_i32_0 : i32, i32
  }
}

</mosaic_0001>

<llo_original>
// kernel: simsiam_forward.1
$region0: #{simsiam_forward.1}
  #allocation0 [shape = 'u32[]', space=smem, size = 0x4, offset = 0x4, fixed_abs, tag = 'smem constant byte address 0x4 - core index']
  #allocation1 [shape = 'u32[72,128]{1,0:T(1,128)}', space=vmem, size = 0x9000, scoped, tag = 'internal scratch']
  #allocation2 [shape = 'f32[64,4]{1,0:T(8,128)}', space=vmem, size = 0x8000, scoped, tag = 'scratch operand']
  %s0 = inlined_call_operand.vmem [shape: bf16[4,4,256], index: 0, kind: input, shape index: {}]
  %s1 = inlined_call_operand.vmem [shape: bf16[4,3,128], index: 1, kind: input, shape index: {}]
  %s2 = inlined_call_operand.vmem [shape: bf16[64,4], index: 2, kind: input, shape index: {}]
  %s3 = inlined_call_operand.vmem [shape: bf16[64,3], index: 3, kind: input, shape index: {}]
  %s4 = inlined_call_operand.vmem [shape: bf16[64,64], index: 4, kind: input, shape index: {}]
  %s5 = inlined_call_operand.vmem [shape: bf16[64,64], index: 5, kind: input, shape index: {}]
  %s6 = inlined_call_operand.vmem [shape: bf16[128,64], index: 6, kind: input, shape index: {}]
  %s7 = inlined_call_operand.vmem [shape: bf16[64,128], index: 7, kind: input, shape index: {}]
  %s8 = inlined_call_operand.vmem [shape: bf16[128,64], index: 8, kind: input, shape index: {}]
  %s9 = inlined_call_operand.vmem [shape: f32[128,8], index: 9, kind: input, shape index: {}]
  %s10 = inlined_call_operand.hbm [shape: f32[1,1], index: 10, kind: output, shape index: {}]
  %s11 = sld [smem:[#allocation0]]
  $region81: #{simsiam_forward.1} parent=0
    _
  %s13 = ssub.s32 1, %s11
  %s14 = scalar_select 0, %s13, %s11
  $region1: #{simsiam_forward.1} parent=0
    #allocation3 [shape = 'u8[512]{0}', space=smem, size = 0x200, scoped, tag = 'output window, operand 0, single buffered']
    #allocation4 [shape = 's32[2]{0}', space=sflag, size = 0x8, scoped, tag = 'scoped memory for simsiam_forward.1']
    %15 = vsyncpa [#allocation4], 0
    loop: start=0, step=1, limit=6
    $region2: #{simsiam_forward.1} parent=1 // loop_pre_header
      _
    $region3: #{simsiam_forward.1} parent=1 // loop_header
      %s17 = sphi 0, %s21
      %p18 = scmp.ge.s32.totalorder %s17, 6
      %s27 = sphi 0, %s29
      %s30 = sphi 0, %s27
      %s31 = sphi 0, %s30
      %s47 = sphi 0, %s31
      %s53 = sphi 0, %s55
      %s56 = sphi 0, %s53
      %s57 = sphi 0, %s56
      %s73 = sphi 0, %s57
      %s77 = sphi 0, %s77
      %s79 = sphi 0, %s77
      %s80 = sphi 0, %s79
      %s94 = sphi 0, %s80
      %s98 = sphi 0, %s98
      %s100 = sphi 0, %s98
      %s101 = sphi 0, %s100
      %s115 = sphi 0, %s101
      %s119 = sphi 0, %s119
      %s121 = sphi 0, %s119
      %s122 = sphi 0, %s121
      %s136 = sphi 0, %s122
      %s140 = sphi 0, %s140
      %s142 = sphi 0, %s140
      %s143 = sphi 0, %s142
      %s157 = sphi 0, %s143
      %s161 = sphi 0, %s161
      %s163 = sphi 0, %s161
      %s164 = sphi 0, %s163
      %s178 = sphi 0, %s164
      %s182 = sphi 0, %s182
      %s184 = sphi 0, %s182
      %s185 = sphi 0, %s184
      %s199 = sphi 0, %s185
      %s203 = sphi 0, %s203
      %s205 = sphi 0, %s203
      %s206 = sphi 0, %s205
      %s220 = sphi 0, %s206
      %s224 = sphi 0, %s224
      %s226 = sphi 0, %s224
      %s227 = sphi 0, %s226
      %s241 = sphi 0, %s227
      %s245 = sphi 0, %s245
      %s247 = sphi 0, %s245
      %s248 = sphi 0, %s247
      %s262 = sphi 0, %s248
    $region4: #{simsiam_forward.1} parent=1 // loop_header_branch
      %20 = sbr.rel (%p18) target = $region8
    $region5: #{simsiam_forward.1} parent=1 // loop_body
      %s22 = ssub.s32 %s17, 1
      %s23 = ssub.s32 %s17, 2
      %s24 = sadd.s32 %s17, 1
      %s25 = ssub.s32 %s17, %s24
      %p26 = scmp.eq.s32.totalorder %s25, 0
      %s28 = sadd.s32 %s27, 1
      %s29 = scalar_select %p26, %s27, %s28
      %p32 = pneg %p26
      %p33 = scmp.eq.s32.totalorder %s17, 3
      %p34 = por %p32, %p33
      %p35 = scmp.ne.s32.totalorder %s27, %s30
      %p36 = scmp.eq.s32.totalorder %s17, 0
      %p37 = por %p35, %p36
      %p38 = scmp.ne.s32.totalorder %s27, %s30
      %p39 = scmp.eq.s32.totalorder %s22, 3
      %p40 = por %p38, %p39
      %p41 = scmp.ne.s32.totalorder %s30, %s31
      %p42 = scmp.eq.s32.totalorder %s22, 0
      %p43 = por %p41, %p42
      %p44 = scmp.ne.s32.totalorder %s30, %s31
      %p45 = scmp.eq.s32.totalorder %s23, 3
      %p46 = por %p44, %p45
      %p48 = scmp.ne.s32.totalorder %s31, %s47
      %p49 = scmp.eq.s32.totalorder %s23, 0
      %p50 = por %p48, %p49
      %s51 = ssub.s32 %s17, %s24
      %p52 = scmp.eq.s32.totalorder %s51, 0
      %s54 = sadd.s32 %s53, 1
      %s55 = scalar_select %p52, %s53, %s54
      %p58 = pneg %p52
      %p59 = scmp.eq.s32.totalorder %s17, 3
      %p60 = por %p58, %p59
      %p61 = scmp.ne.s32.totalorder %s53, %s56
      %p62 = scmp.eq.s32.totalorder %s17, 0
      %p63 = por %p61, %p62
      %p64 = scmp.ne.s32.totalorder %s53, %s56
      %p65 = scmp.eq.s32.totalorder %s22, 3
      %p66 = por %p64, %p65
      %p67 = scmp.ne.s32.totalorder %s56, %s57
      %p68 = scmp.eq.s32.totalorder %s22, 0
      %p69 = por %p67, %p68
      %p70 = scmp.ne.s32.totalorder %s56, %s57
      %p71 = scmp.eq.s32.totalorder %s23, 3
      %p72 = por %p70, %p71
      %p74 = scmp.ne.s32.totalorder %s57, %s73
      %p75 = scmp.eq.s32.totalorder %s23, 0
      %p76 = por %p74, %p75
      %s78 = sadd.s32 %s77, 1
      %p81 = scmp.eq.s32.totalorder %s17, 3
      %p82 = scmp.ne.s32.totalorder %s77, %s79
      %p83 = scmp.eq.s32.totalorder %s17, 0
      %p84 = por %p82, %p83
      %p85 = scmp.ne.s32.totalorder %s77, %s79
      %p86 = scmp.eq.s32.totalorder %s22, 3
      %p87 = por %p85, %p86
      %p88 = scmp.ne.s32.totalorder %s79, %s80
      %p89 = scmp.eq.s32.totalorder %s22, 0
      %p90 = por %p88, %p89
      %p91 = scmp.ne.s32.totalorder %s79, %s80
      %p92 = scmp.eq.s32.totalorder %s23, 3
      %p93 = por %p91, %p92
      %p95 = scmp.ne.s32.totalorder %s80, %s94
      %p96 = scmp.eq.s32.totalorder %s23, 0
      %p97 = por %p95, %p96
      %s99 = sadd.s32 %s98, 1
      %p102 = scmp.eq.s32.totalorder %s17, 3
      %p103 = scmp.ne.s32.totalorder %s98, %s100
      %p104 = scmp.eq.s32.totalorder %s17, 0
      %p105 = por %p103, %p104
      %p106 = scmp.ne.s32.totalorder %s98, %s100
      %p107 = scmp.eq.s32.totalorder %s22, 3
      %p108 = por %p106, %p107
      %p109 = scmp.ne.s32.totalorder %s100, %s101
      %p110 = scmp.eq.s32.totalorder %s22, 0
      %p111 = por %p109, %p110
      %p112 = scmp.ne.s32.totalorder %s100, %s101
      %p113 = scmp.eq.s32.totalorder %s23, 3
      %p114 = por %p112, %p113
      %p116 = scmp.ne.s32.totalorder %s101, %s115
      %p117 = scmp.eq.s32.totalorder %s23, 0
      %p118 = por %p116, %p117
      %s120 = sadd.s32 %s119, 1
      %p123 = scmp.eq.s32.totalorder %s17, 3
      %p124 = scmp.ne.s32.totalorder %s119, %s121
      %p125 = scmp.eq.s32.totalorder %s17, 0
      %p126 = por %p124, %p125
      %p127 = scmp.ne.s32.totalorder %s119, %s121
      %p128 = scmp.eq.s32.totalorder %s22, 3
      %p129 = por %p127, %p128
      %p130 = scmp.ne.s32.totalorder %s121, %s122
      %p131 = scmp.eq.s32.totalorder %s22, 0
      %p132 = por %p130, %p131
      %p133 = scmp.ne.s32.totalorder %s121, %s122
      %p134 = scmp.eq.s32.totalorder %s23, 3
      %p135 = por %p133, %p134
      %p137 = scmp.ne.s32.totalorder %s122, %s136
      %p138 = scmp.eq.s32.totalorder %s23, 0
      %p139 = por %p137, %p138
      %s141 = sadd.s32 %s140, 1
      %p144 = scmp.eq.s32.totalorder %s17, 3
      %p145 = scmp.ne.s32.totalorder %s140, %s142
      %p146 = scmp.eq.s32.totalorder %s17, 0
      %p147 = por %p145, %p146
      %p148 = scmp.ne.s32.totalorder %s140, %s142
      %p149 = scmp.eq.s32.totalorder %s22, 3
      %p150 = por %p148, %p149
      %p151 = scmp.ne.s32.totalorder %s142, %s143
      %p152 = scmp.eq.s32.totalorder %s22, 0
      %p153 = por %p151, %p152
      %p154 = scmp.ne.s32.totalorder %s142, %s143
      %p155 = scmp.eq.s32.totalorder %s23, 3
      %p156 = por %p154, %p155
      %p158 = scmp.ne.s32.totalorder %s143, %s157
      %p159 = scmp.eq.s32.totalorder %s23, 0
      %p160 = por %p158, %p159
      %s162 = sadd.s32 %s161, 1
      %p165 = scmp.eq.s32.totalorder %s17, 3
      %p166 = scmp.ne.s32.totalorder %s161, %s163
      %p167 = scmp.eq.s32.totalorder %s17, 0
      %p168 = por %p166, %p167
      %p169 = scmp.ne.s32.totalorder %s161, %s163
      %p170 = scmp.eq.s32.totalorder %s22, 3
      %p171 = por %p169, %p170
      %p172 = scmp.ne.s32.totalorder %s163, %s164
      %p173 = scmp.eq.s32.totalorder %s22, 0
      %p174 = por %p172, %p173
      %p175 = scmp.ne.s32.totalorder %s163, %s164
      %p176 = scmp.eq.s32.totalorder %s23, 3
      %p177 = por %p175, %p176
      %p179 = scmp.ne.s32.totalorder %s164, %s178
      %p180 = scmp.eq.s32.totalorder %s23, 0
      %p181 = por %p179, %p180
      %s183 = sadd.s32 %s182, 1
      %p186 = scmp.eq.s32.totalorder %s17, 3
      %p187 = scmp.ne.s32.totalorder %s182, %s184
      %p188 = scmp.eq.s32.totalorder %s17, 0
      %p189 = por %p187, %p188
      %p190 = scmp.ne.s32.totalorder %s182, %s184
      %p191 = scmp.eq.s32.totalorder %s22, 3
      %p192 = por %p190, %p191
      %p193 = scmp.ne.s32.totalorder %s184, %s185
      %p194 = scmp.eq.s32.totalorder %s22, 0
      %p195 = por %p193, %p194
      %p196 = scmp.ne.s32.totalorder %s184, %s185
      %p197 = scmp.eq.s32.totalorder %s23, 3
      %p198 = por %p196, %p197
      %p200 = scmp.ne.s32.totalorder %s185, %s199
      %p201 = scmp.eq.s32.totalorder %s23, 0
      %p202 = por %p200, %p201
      %s204 = sadd.s32 %s203, 1
      %p207 = scmp.eq.s32.totalorder %s17, 3
      %p208 = scmp.ne.s32.totalorder %s203, %s205
      %p209 = scmp.eq.s32.totalorder %s17, 0
      %p210 = por %p208, %p209
      %p211 = scmp.ne.s32.totalorder %s203, %s205
      %p212 = scmp.eq.s32.totalorder %s22, 3
      %p213 = por %p211, %p212
      %p214 = scmp.ne.s32.totalorder %s205, %s206
      %p215 = scmp.eq.s32.totalorder %s22, 0
      %p216 = por %p214, %p215
      %p217 = scmp.ne.s32.totalorder %s205, %s206
      %p218 = scmp.eq.s32.totalorder %s23, 3
      %p219 = por %p217, %p218
      %p221 = scmp.ne.s32.totalorder %s206, %s220
      %p222 = scmp.eq.s32.totalorder %s23, 0
      %p223 = por %p221, %p222
      %s225 = sadd.s32 %s224, 1
      %p228 = scmp.eq.s32.totalorder %s17, 3
      %p229 = scmp.ne.s32.totalorder %s224, %s226
      %p230 = scmp.eq.s32.totalorder %s17, 0
      %p231 = por %p229, %p230
      %p232 = scmp.ne.s32.totalorder %s224, %s226
      %p233 = scmp.eq.s32.totalorder %s22, 3
      %p234 = por %p232, %p233
      %p235 = scmp.ne.s32.totalorder %s226, %s227
      %p236 = scmp.eq.s32.totalorder %s22, 0
      %p237 = por %p235, %p236
      %p238 = scmp.ne.s32.totalorder %s226, %s227
      %p239 = scmp.eq.s32.totalorder %s23, 3
      %p240 = por %p238, %p239
      %p242 = scmp.ne.s32.totalorder %s227, %s241
      %p243 = scmp.eq.s32.totalorder %s23, 0
      %p244 = por %p242, %p243
      %s246 = sadd.s32 %s245, 1
      %p249 = scmp.eq.s32.totalorder %s17, 3
      %p250 = scmp.ne.s32.totalorder %s245, %s247
      %p251 = scmp.eq.s32.totalorder %s17, 0
      %p252 = por %p250, %p251
      %p253 = scmp.ne.s32.totalorder %s245, %s247
      %p254 = scmp.eq.s32.totalorder %s22, 3
      %p255 = por %p253, %p254
      %p256 = scmp.ne.s32.totalorder %s247, %s248
      %p257 = scmp.eq.s32.totalorder %s22, 0
      %p258 = por %p256, %p257
      %p259 = scmp.ne.s32.totalorder %s247, %s248
      %p260 = scmp.eq.s32.totalorder %s23, 3
      %p261 = por %p259, %p260
      %p263 = scmp.ne.s32.totalorder %s248, %s262
      %p264 = scmp.eq.s32.totalorder %s23, 0
      %p265 = por %p263, %p264
      %p266 = scmp.le.s32.totalorder 1, %s17
      %p267 = scmp.lt.s32.totalorder %s17, 5
      %p268 = pnand %p266, %p267
      %p269 = pneg %p268
      // Predicated region
      $region9: #{simsiam_forward.1} parent=5 // pred_check
        _
      $region10: #{simsiam_forward.1} parent=5 // pred_check_branch
        %271 = sbr.rel (%p268) target = $region12
      $region11: #{simsiam_forward.1} parent=5 // pred_region
        %s272 = ssub.s32 %s17, 1
        // Predicated region
        $region13: #{simsiam_forward.1} parent=11 // pred_check
          %p273 = pneg %p90
        $region14: #{simsiam_forward.1} parent=11 // pred_check_branch
          %275 = sbr.rel (%p273) target = $region16
        $region15: #{simsiam_forward.1} parent=11 // pred_region
          _
        $region16: #{simsiam_forward.1} parent=11 // pred_fallthru
          _
        // Predicated region
        $region17: #{simsiam_forward.1} parent=11 // pred_check
          %p276 = pneg %p111
        $region18: #{simsiam_forward.1} parent=11 // pred_check_branch
          %278 = sbr.rel (%p276) target = $region20
        $region19: #{simsiam_forward.1} parent=11 // pred_region
          _
        $region20: #{simsiam_forward.1} parent=11 // pred_fallthru
          _
        // Predicated region
        $region21: #{simsiam_forward.1} parent=11 // pred_check
          %p279 = pneg %p132
        $region22: #{simsiam_forward.1} parent=11 // pred_check_branch
          %281 = sbr.rel (%p279) target = $region24
        $region23: #{simsiam_forward.1} parent=11 // pred_region
          _
        $region24: #{simsiam_forward.1} parent=11 // pred_fallthru
          _
        // Predicated region
        $region25: #{simsiam_forward.1} parent=11 // pred_check
          %p282 = pneg %p153
        $region26: #{simsiam_forward.1} parent=11 // pred_check_branch
          %284 = sbr.rel (%p282) target = $region28
        $region27: #{simsiam_forward.1} parent=11 // pred_region
          _
        $region28: #{simsiam_forward.1} parent=11 // pred_fallthru
          _
        // Predicated region
        $region29: #{simsiam_forward.1} parent=11 // pred_check
          %p285 = pneg %p174
        $region30: #{simsiam_forward.1} parent=11 // pred_check_branch
          %287 = sbr.rel (%p285) target = $region32
        $region31: #{simsiam_forward.1} parent=11 // pred_region
          _
        $region32: #{simsiam_forward.1} parent=11 // pred_fallthru
          _
        // Predicated region
        $region33: #{simsiam_forward.1} parent=11 // pred_check
          %p288 = pneg %p195
        $region34: #{simsiam_forward.1} parent=11 // pred_check_branch
          %290 = sbr.rel (%p288) target = $region36
        $region35: #{simsiam_forward.1} parent=11 // pred_region
          _
        $region36: #{simsiam_forward.1} parent=11 // pred_fallthru
          _
        // Predicated region
        $region37: #{simsiam_forward.1} parent=11 // pred_check
          %p291 = pneg %p216
        $region38: #{simsiam_forward.1} parent=11 // pred_check_branch
          %293 = sbr.rel (%p291) target = $region40
        $region39: #{simsiam_forward.1} parent=11 // pred_region
          _
        $region40: #{simsiam_forward.1} parent=11 // pred_fallthru
          _
        // Predicated region
        $region41: #{simsiam_forward.1} parent=11 // pred_check
          %p294 = pneg %p237
        $region42: #{simsiam_forward.1} parent=11 // pred_check_branch
          %296 = sbr.rel (%p294) target = $region44
        $region43: #{simsiam_forward.1} parent=11 // pred_region
          _
        $region44: #{simsiam_forward.1} parent=11 // pred_fallthru
          _
      $region12: #{simsiam_forward.1} parent=5 // pred_fallthru
        _
      %p297 = scmp.lt.s32.totalorder %s17, 4
      // Predicated region
      $region45: #{simsiam_forward.1} parent=5 // pred_check
        %p298 = pneg %p297
      $region46: #{simsiam_forward.1} parent=5 // pred_check_branch
        %300 = sbr.rel (%p298) target = $region48
      $region47: #{simsiam_forward.1} parent=5 // pred_region
        // Predicated region
        $region49: #{simsiam_forward.1} parent=47 // pred_check
          %p301 = pneg %p37
        $region50: #{simsiam_forward.1} parent=47 // pred_check_branch
          %303 = sbr.rel (%p301) target = $region52
        $region51: #{simsiam_forward.1} parent=47 // pred_region
          %p304 = scmp.lt.s32.totalorder %s17, 3
          %s305 = scalar_select %p304, %s17, 3
          %s306 = smul.addr %s305, 2
          %s307 = smul.addr %s306, 2
          %s308 = scalar_lea.vmem %s0, %s307
        $region52: #{simsiam_forward.1} parent=47 // pred_fallthru
          _
        // Predicated region
        $region53: #{simsiam_forward.1} parent=47 // pred_check
          %p309 = pneg %p63
        $region54: #{simsiam_forward.1} parent=47 // pred_check_branch
          %311 = sbr.rel (%p309) target = $region56
        $region55: #{simsiam_forward.1} parent=47 // pred_region
          %p312 = scmp.lt.s32.totalorder %s17, 3
          %s313 = scalar_select %p312, %s17, 3
          %s314 = smul.addr %s313, 2
          %s315 = scalar_lea.vmem %s1, %s314
        $region56: #{simsiam_forward.1} parent=47 // pred_fallthru
          _
      $region48: #{simsiam_forward.1} parent=5 // pred_fallthru
        _
      %p316 = scmp.le.s32.totalorder 1, %s17
      %p317 = scmp.lt.s32.totalorder %s17, 5
      %p318 = pnand %p316, %p317
      %p319 = pneg %p318
      // Predicated region
      $region57: #{simsiam_forward.1} parent=5 // pred_check
        _
      $region58: #{simsiam_forward.1} parent=5 // pred_check_branch
        %321 = sbr.rel (%p318) target = $region60
      $region59: #{simsiam_forward.1} parent=5 // pred_region
        %s322 = ssub.s32 %s17, 1
        %p323 = scmp.lt.s32.totalorder %s22, 3
        %s324 = scalar_select %p323, %s22, 3
        %s325 = smul.addr %s324, 2
        %s326 = smul.addr %s325, 2
        %s327 = scalar_lea.vmem %s0, %s326
        %p328 = pneg %p43
        %p329 = pneg %p40
        %p330 = scmp.lt.s32.totalorder %s22, 3
        %s331 = scalar_select %p330, %s22, 3
        %s332 = smul.addr %s331, 2
        %s333 = scalar_lea.vmem %s1, %s332
        %p334 = pneg %p69
        %p335 = pneg %p66
        %p336 = pneg %p90
        %p337 = pneg %p87
        %p338 = pneg %p111
        %p339 = pneg %p108
        %p340 = pneg %p132
        %p341 = pneg %p129
        %p342 = pneg %p153
        %p343 = pneg %p150
        %p344 = pneg %p174
        %p345 = pneg %p171
        %p346 = pneg %p195
        %p347 = pneg %p192
        %p348 = pneg %p216
        %p349 = pneg %p213
        %p350 = pneg %p237
        %p351 = pneg %p234
        %p352 = pneg %p258
        %p353 = pneg %p255
        %p354 = scmp.lt.s32.totalorder %s22, 3
        %s355 = scalar_select %p354, %s22, 3
        %s356 = smul.addr %s355, 2
        %s357 = smul.addr %s356, 2
        %s358 = scalar_lea.vmem %s0, %s357
        %p359 = scmp.lt.s32.totalorder %s22, 3
        %s360 = scalar_select %p359, %s22, 3
        %s361 = smul.addr %s360, 2
        %s362 = scalar_lea.vmem %s1, %s361
        %v364 = vld [vmem:[%s358] sm:$0xf]
        %v365 = vld [vmem:[%s362] sm:$0x3]
        %v366 = vld [vmem:[%s2] sm:$0xf]
        %v367 = vld [vmem:[%s2 + $0x4] sm:$0xf]
        %v368 = vld [vmem:[%s2 + $0x8] sm:$0xf]
        %v369 = vld [vmem:[%s2 + $0xc] sm:$0xf]
        %v370 = vld [vmem:[%s2 + $0x10] sm:$0xf]
        %v371 = vld [vmem:[%s2 + $0x14] sm:$0xf]
        %v372 = vld [vmem:[%s2 + $0x18] sm:$0xf]
        %v373 = vld [vmem:[%s2 + $0x1c] sm:$0xf]
        %v382 = vunpack.c.l.b16 %v366
        %v383 = vunpack.c.l.b16 %v367
        %v384 = vunpack.c.l.b16 %v368
        %v385 = vunpack.c.l.b16 %v369
        %v386 = vunpack.c.l.b16 %v370
        %v387 = vunpack.c.l.b16 %v371
        %v388 = vunpack.c.l.b16 %v372
        %v389 = vunpack.c.l.b16 %v373
        %v390 = vpack.c.b16 %v383, %v382
        %v391 = vpack.c.b16 %v385, %v384
        %v392 = vpack.c.b16 %v387, %v386
        %v393 = vpack.c.b16 %v389, %v388
        %395 = vst [vmem:[#allocation1] ss:$4 sm:$0xff] %v364
        %v396 = vld.sshfl [vmem:[#allocation1] sm:$0xff pattern:$0x73625140]
        %v397 = vld.sshfl [vmem:[#allocation1 + $0x8] sm:$0xff pattern:$0x73625140]
        %vm398 = vcmask 31744
        %v400 = vsel %vm398, %v390, 0
        %v403 = vsel %vm398, %v391, 0
        %v406 = vsel %vm398, %v392, 0
        %v409 = vsel %vm398, %v393, 0
        %vm411 = vcmask 1041408
        %v412 = vsel %vm411, %v396, 0
        %v414 = vsel %vm411, %v397, 0
        %416 = vmatpush.bf16.msra.mxu0 0
        %417 = vmatpush.bf16.msra.mxu0 0
        %418 = vmatpush.bf16.msra.mxu0 0
        %419 = vmatpush.bf16.msra.mxu0 0
        %420 = vmatpush.bf16.msra.mxu0 0
        %421 = vmatpush.bf16.msra.mxu0 0
        %422 = vmatpush.bf16.msra.mxu0 0
        %423 = vmatpush.bf16.msra.mxu0 %v412
        %424 = vmatmul.bf16.gmra.mxu0 %v400
        %v425 = vpop.f32.mrf.mxu0
        %v426 = vadd.f32 0.0, %v425
        %v427 = vpop.f32.mrf.mxu0
        %v428 = vadd.f32 0.0, %v427
        %429 = vmatmul.bf16.gmra.mxu0 %v403
        %v430 = vpop.f32.mrf.mxu0
        %v431 = vadd.f32 0.0, %v430
        %v432 = vpop.f32.mrf.mxu0
        %v433 = vadd.f32 0.0, %v432
        %434 = vmatmul.bf16.gmra.mxu0 %v406
        %v435 = vpop.f32.mrf.mxu0
        %v436 = vadd.f32 0.0, %v435
        %v437 = vpop.f32.mrf.mxu0
        %v438 = vadd.f32 0.0, %v437
        %439 = vmatmul.bf16.gmra.mxu0 %v409
        %v440 = vpop.f32.mrf.mxu0
        %v441 = vadd.f32 0.0, %v440
        %v442 = vpop.f32.mrf.mxu0
        %v443 = vadd.f32 0.0, %v442
        %444 = vdwg.mxu0
        %445 = vmatpush.bf16.msra.mxu0 0
        %446 = vmatpush.bf16.msra.mxu0 0
        %447 = vmatpush.bf16.msra.mxu0 0
        %448 = vmatpush.bf16.msra.mxu0 0
        %449 = vmatpush.bf16.msra.mxu0 0
        %450 = vmatpush.bf16.msra.mxu0 0
        %451 = vmatpush.bf16.msra.mxu0 0
        %452 = vmatpush.bf16.msra.mxu0 %v414
        %453 = vmatmul.bf16.gmra.mxu0 %v400
        %v454 = vpop.f32.mrf.mxu0
        %v455 = vadd.f32 0.0, %v454
        %v456 = vpop.f32.mrf.mxu0
        %v457 = vadd.f32 0.0, %v456
        %458 = vmatmul.bf16.gmra.mxu0 %v403
        %v459 = vpop.f32.mrf.mxu0
        %v460 = vadd.f32 0.0, %v459
        %v461 = vpop.f32.mrf.mxu0
        %v462 = vadd.f32 0.0, %v461
        %463 = vmatmul.bf16.gmra.mxu0 %v406
        %v464 = vpop.f32.mrf.mxu0
        %v465 = vadd.f32 0.0, %v464
        %v466 = vpop.f32.mrf.mxu0
        %v467 = vadd.f32 0.0, %v466
        %468 = vmatmul.bf16.gmra.mxu0 %v409
        %v469 = vpop.f32.mrf.mxu0
        %v470 = vadd.f32 0.0, %v469
        %v471 = vpop.f32.mrf.mxu0
        %v472 = vadd.f32 0.0, %v471
        %473 = vdwg.mxu0
        %v474 = vmax.f32 %v426, 0.0
        %v475 = vmax.f32 %v455, 0.0
        %v476 = vmax.f32 %v428, 0.0
        %v477 = vmax.f32 %v457, 0.0
        %v478 = vmax.f32 %v431, 0.0
        %v479 = vmax.f32 %v460, 0.0
        %v480 = vmax.f32 %v433, 0.0
        %v481 = vmax.f32 %v462, 0.0
        %v482 = vmax.f32 %v436, 0.0
        %v483 = vmax.f32 %v465, 0.0
        %v484 = vmax.f32 %v438, 0.0
        %v485 = vmax.f32 %v467, 0.0
        %v486 = vmax.f32 %v441, 0.0
        %v487 = vmax.f32 %v470, 0.0
        %v488 = vmax.f32 %v443, 0.0
        %v489 = vmax.f32 %v472, 0.0
        %v490 = vld [vmem:[%s3] sm:$0xf]
        %v491 = vld [vmem:[%s3 + $0x4] sm:$0xf]
        %v492 = vld [vmem:[%s3 + $0x8] sm:$0xf]
        %v493 = vld [vmem:[%s3 + $0xc] sm:$0xf]
        %v494 = vld [vmem:[%s3 + $0x10] sm:$0xf]
        %v495 = vld [vmem:[%s3 + $0x14] sm:$0xf]
        %v496 = vld [vmem:[%s3 + $0x18] sm:$0xf]
        %v497 = vld [vmem:[%s3 + $0x1c] sm:$0xf]
        %v506 = vunpack.c.l.b16 %v490
        %v507 = vunpack.c.l.b16 %v491
        %v508 = vunpack.c.l.b16 %v492
        %v509 = vunpack.c.l.b16 %v493
        %v510 = vunpack.c.l.b16 %v494
        %v511 = vunpack.c.l.b16 %v495
        %v512 = vunpack.c.l.b16 %v496
        %v513 = vunpack.c.l.b16 %v497
        %v514 = vpack.c.b16 %v507, %v506
        %v515 = vpack.c.b16 %v509, %v508
        %v516 = vpack.c.b16 %v511, %v510
        %v517 = vpack.c.b16 %v513, %v512
        %vm518 = vcmask 23552
        %v520 = vsel %vm518, %v514, 0
        %v523 = vsel %vm518, %v515, 0
        %v526 = vsel %vm518, %v516, 0
        %v529 = vsel %vm518, %v517, 0
        %vm531 = vcmask 1040384
        %v532 = vsel %vm531, 4294967295, 65535
        %v533 = vsel %vm411, %v532, 0
        %v535 = vand.u32 %v365, %v533
        %537 = vmatpush.bf16.msra.mxu0 0
        %538 = vmatpush.bf16.msra.mxu0 0
        %539 = vmatpush.bf16.msra.mxu0 0
        %540 = vmatpush.bf16.msra.mxu0 0
        %541 = vmatpush.bf16.msra.mxu0 0
        %542 = vmatpush.bf16.msra.mxu0 0
        %543 = vmatpush.bf16.msra.mxu0 0
        %544 = vmatpush.bf16.msra.mxu0 %v535
        %545 = vmatmul.bf16.gmra.mxu0 %v520
        %v546 = vpop.f32.mrf.mxu0
        %v547 = vadd.f32 0.0, %v546
        %v548 = vpop.f32.mrf.mxu0
        %v549 = vadd.f32 0.0, %v548
        %550 = vmatmul.bf16.gmra.mxu0 %v523
        %v551 = vpop.f32.mrf.mxu0
        %v552 = vadd.f32 0.0, %v551
        %v553 = vpop.f32.mrf.mxu0
        %v554 = vadd.f32 0.0, %v553
        %555 = vmatmul.bf16.gmra.mxu0 %v526
        %v556 = vpop.f32.mrf.mxu0
        %v557 = vadd.f32 0.0, %v556
        %v558 = vpop.f32.mrf.mxu0
        %v559 = vadd.f32 0.0, %v558
        %560 = vmatmul.bf16.gmra.mxu0 %v529
        %v561 = vpop.f32.mrf.mxu0
        %v562 = vadd.f32 0.0, %v561
        %v563 = vpop.f32.mrf.mxu0
        %v564 = vadd.f32 0.0, %v563
        %565 = vdwg.mxu0
        %v566 = vmax.f32 %v547, 0.0
        %v567 = vmax.f32 %v549, 0.0
        %v568 = vmax.f32 %v552, 0.0
        %v569 = vmax.f32 %v554, 0.0
        %v570 = vmax.f32 %v557, 0.0
        %v571 = vmax.f32 %v559, 0.0
        %v572 = vmax.f32 %v562, 0.0
        %v573 = vmax.f32 %v564, 0.0
        %v574 = vadd.f32 %v474, %v475
        %575 = vadd.xlane.f32.xlu0 %v574
        %v576 = vpop.xlane.xlu0 %575
        %v577 = vadd.f32 %v476, %v477
        %578 = vadd.xlane.f32.xlu0 %v577
        %v579 = vpop.xlane.xlu0 %578
        %v580 = vadd.f32 %v478, %v479
        %581 = vadd.xlane.f32.xlu0 %v580
        %v582 = vpop.xlane.xlu0 %581
        %v583 = vadd.f32 %v480, %v481
        %584 = vadd.xlane.f32.xlu0 %v583
        %v585 = vpop.xlane.xlu0 %584
        %v586 = vadd.f32 %v482, %v483
        %587 = vadd.xlane.f32.xlu0 %v586
        %v588 = vpop.xlane.xlu0 %587
        %v589 = vadd.f32 %v484, %v485
        %590 = vadd.xlane.f32.xlu0 %v589
        %v591 = vpop.xlane.xlu0 %590
        %v592 = vadd.f32 %v486, %v487
        %593 = vadd.xlane.f32.xlu0 %v592
        %v594 = vpop.xlane.xlu0 %593
        %v595 = vadd.f32 %v488, %v489
        %596 = vadd.xlane.f32.xlu0 %v595
        %v597 = vpop.xlane.xlu0 %596
        %v598 = vmul.f32 %v576, 0.00390625
        %v599 = vmul.f32 %v579, 0.00390625
        %v600 = vmul.f32 %v582, 0.00390625
        %v601 = vmul.f32 %v585, 0.00390625
        %v602 = vmul.f32 %v588, 0.00390625
        %v603 = vmul.f32 %v591, 0.00390625
        %v604 = vmul.f32 %v594, 0.00390625
        %v605 = vmul.f32 %v597, 0.00390625
        %606 = vadd.xlane.f32.xlu0 %v566
        %v607 = vpop.xlane.xlu0 %606
        %608 = vadd.xlane.f32.xlu0 %v567
        %v609 = vpop.xlane.xlu0 %608
        %610 = vadd.xlane.f32.xlu0 %v568
        %v611 = vpop.xlane.xlu0 %610
        %612 = vadd.xlane.f32.xlu0 %v569
        %v613 = vpop.xlane.xlu0 %612
        %614 = vadd.xlane.f32.xlu0 %v570
        %v615 = vpop.xlane.xlu0 %614
        %616 = vadd.xlane.f32.xlu0 %v571
        %v617 = vpop.xlane.xlu0 %616
        %618 = vadd.xlane.f32.xlu0 %v572
        %v619 = vpop.xlane.xlu0 %618
        %620 = vadd.xlane.f32.xlu0 %v573
        %v621 = vpop.xlane.xlu0 %620
        %v622 = vmul.f32 %v607, 0.0078125
        %v623 = vmul.f32 %v609, 0.0078125
        %v624 = vmul.f32 %v611, 0.0078125
        %v625 = vmul.f32 %v613, 0.0078125
        %v626 = vmul.f32 %v615, 0.0078125
        %v627 = vmul.f32 %v617, 0.0078125
        %v628 = vmul.f32 %v619, 0.0078125
        %v629 = vmul.f32 %v621, 0.0078125
        %v630 = vadd.f32 %v598, %v622
        %v631 = vadd.f32 %v599, %v623
        %v632 = vadd.f32 %v600, %v624
        %v633 = vadd.f32 %v601, %v625
        %v634 = vadd.f32 %v602, %v626
        %v635 = vadd.f32 %v603, %v627
        %v636 = vadd.f32 %v604, %v628
        %v637 = vadd.f32 %v605, %v629
        %p638 = scmp.eq.s32.totalorder %s22, 0
        // Predicated region
        $region61: #{simsiam_forward.1} parent=59 // pred_check
          %p639 = pneg %p638
        $region62: #{simsiam_forward.1} parent=59 // pred_check_branch
          %641 = sbr.rel (%p639) target = $region64
        $region63: #{simsiam_forward.1} parent=59 // pred_region
          %642 = vst.msk [vmem:[#allocation2] sm:$0xff] %vm398, 0.0
          %643 = vst.msk [vmem:[#allocation2 + $0x8] sm:$0xff] %vm398, 0.0
          %644 = vst.msk [vmem:[#allocation2 + $0x10] sm:$0xff] %vm398, 0.0
          %645 = vst.msk [vmem:[#allocation2 + $0x18] sm:$0xff] %vm398, 0.0
          %646 = vst.msk [vmem:[#allocation2 + $0x20] sm:$0xff] %vm398, 0.0
          %647 = vst.msk [vmem:[#allocation2 + $0x28] sm:$0xff] %vm398, 0.0
          %648 = vst.msk [vmem:[#allocation2 + $0x30] sm:$0xff] %vm398, 0.0
          %649 = vst.msk [vmem:[#allocation2 + $0x38] sm:$0xff] %vm398, 0.0
        $region64: #{simsiam_forward.1} parent=59 // pred_fallthru
          _
        %v650 = vlaneseq
        %v651 = vand.u32 %v650, 127
        %v652 = vstv %s22
        %vm653 = vcmp.eq.s32.totalorder %v651, %v652
        %v654 = vsel %vm653, 1, 0
        %v655 = vcvt.s32.f32 %v654
        %v656 = vld [vmem:[#allocation2] sm:$0xff]
        %v657 = vld [vmem:[#allocation2 + $0x8] sm:$0xff]
        %v658 = vld [vmem:[#allocation2 + $0x10] sm:$0xff]
        %v659 = vld [vmem:[#allocation2 + $0x18] sm:$0xff]
        %v660 = vld [vmem:[#allocation2 + $0x20] sm:$0xff]
        %v661 = vld [vmem:[#allocation2 + $0x28] sm:$0xff]
        %v662 = vld [vmem:[#allocation2 + $0x30] sm:$0xff]
        %v663 = vld [vmem:[#allocation2 + $0x38] sm:$0xff]
        %v664 = vmul.f32 %v630, %v655
        %v665 = vmul.f32 %v631, %v655
        %v666 = vmul.f32 %v632, %v655
        %v667 = vmul.f32 %v633, %v655
        %v668 = vmul.f32 %v634, %v655
        %v669 = vmul.f32 %v635, %v655
        %v670 = vmul.f32 %v636, %v655
        %v671 = vmul.f32 %v637, %v655
        %v672 = vadd.f32 %v656, %v664
        %v673 = vadd.f32 %v657, %v665
        %v674 = vadd.f32 %v658, %v666
        %v675 = vadd.f32 %v659, %v667
        %v676 = vadd.f32 %v660, %v668
        %v677 = vadd.f32 %v661, %v669
        %v678 = vadd.f32 %v662, %v670
        %v679 = vadd.f32 %v663, %v671
        %680 = vst.msk [vmem:[#allocation2] sm:$0xff] %vm398, %v672
        %681 = vst.msk [vmem:[#allocation2 + $0x8] sm:$0xff] %vm398, %v673
        %682 = vst.msk [vmem:[#allocation2 + $0x10] sm:$0xff] %vm398, %v674
        %683 = vst.msk [vmem:[#allocation2 + $0x18] sm:$0xff] %vm398, %v675
        %684 = vst.msk [vmem:[#allocation2 + $0x20] sm:$0xff] %vm398, %v676
        %685 = vst.msk [vmem:[#allocation2 + $0x28] sm:$0xff] %vm398, %v677
        %686 = vst.msk [vmem:[#allocation2 + $0x30] sm:$0xff] %vm398, %v678
        %687 = vst.msk [vmem:[#allocation2 + $0x38] sm:$0xff] %vm398, %v679
        %p688 = scmp.eq.s32.totalorder %s22, 3
        // Predicated region
        $region65: #{simsiam_forward.1} parent=59 // pred_check
          %p689 = pneg %p688
        $region66: #{simsiam_forward.1} parent=59 // pred_check_branch
          %691 = sbr.rel (%p689) target = $region68
        $region67: #{simsiam_forward.1} parent=59 // pred_region
          %v692 = vld [vmem:[%s9] sm:$0xff]
          %v693 = vld [vmem:[%s9 + $0x8] sm:$0xff]
          %v694 = vld [vmem:[%s9 + $0x10] sm:$0xff]
          %v695 = vld [vmem:[%s9 + $0x18] sm:$0xff]
          %v696 = vld [vmem:[%s9 + $0x20] sm:$0xff]
          %v697 = vld [vmem:[%s9 + $0x28] sm:$0xff]
          %v698 = vld [vmem:[%s9 + $0x30] sm:$0xff]
          %v699 = vld [vmem:[%s9 + $0x38] sm:$0xff]
          %v700 = vld [vmem:[%s9 + $0x40] sm:$0xff]
          %v701 = vld [vmem:[%s9 + $0x48] sm:$0xff]
          %v702 = vld [vmem:[%s9 + $0x50] sm:$0xff]
          %v703 = vld [vmem:[%s9 + $0x58] sm:$0xff]
          %v704 = vld [vmem:[%s9 + $0x60] sm:$0xff]
          %v705 = vld [vmem:[%s9 + $0x68] sm:$0xff]
          %v706 = vld [vmem:[%s9 + $0x70] sm:$0xff]
          %v707 = vld [vmem:[%s9 + $0x78] sm:$0xff]
          %v708 = vld [vmem:[#allocation2] sm:$0xff]
          %v709 = vld [vmem:[#allocation2 + $0x8] sm:$0xff]
          %v710 = vld [vmem:[#allocation2 + $0x10] sm:$0xff]
          %v711 = vld [vmem:[#allocation2 + $0x18] sm:$0xff]
          %v712 = vld [vmem:[#allocation2 + $0x20] sm:$0xff]
          %v713 = vld [vmem:[#allocation2 + $0x28] sm:$0xff]
          %v714 = vld [vmem:[#allocation2 + $0x30] sm:$0xff]
          %v715 = vld [vmem:[#allocation2 + $0x38] sm:$0xff]
          %v716 = vld [vmem:[%s4] sm:$0xf]
          %v717 = vld [vmem:[%s4 + $0x4] sm:$0xf]
          %v718 = vld [vmem:[%s4 + $0x8] sm:$0xf]
          %v719 = vld [vmem:[%s4 + $0xc] sm:$0xf]
          %v720 = vld [vmem:[%s4 + $0x10] sm:$0xf]
          %v721 = vld [vmem:[%s4 + $0x14] sm:$0xf]
          %v722 = vld [vmem:[%s4 + $0x18] sm:$0xf]
          %v723 = vld [vmem:[%s4 + $0x1c] sm:$0xf]
          %v724 = vpack.c.bf16 %v709, %v708
          %v725 = vpack.c.bf16 %v711, %v710
          %v726 = vpack.c.bf16 %v713, %v712
          %v727 = vpack.c.bf16 %v715, %v714
          %v736 = vunpack.c.l.b16 %v716
          %v737 = vunpack.c.l.b16 %v717
          %v738 = vunpack.c.l.b16 %v718
          %v739 = vunpack.c.l.b16 %v719
          %v740 = vunpack.c.l.b16 %v720
          %v741 = vunpack.c.l.b16 %v721
          %v742 = vunpack.c.l.b16 %v722
          %v743 = vunpack.c.l.b16 %v723
          %v744 = vpack.c.b16 %v737, %v736
          %v745 = vpack.c.b16 %v739, %v738
          %v746 = vpack.c.b16 %v741, %v740
          %v747 = vpack.c.b16 %v743, %v742
          %vm748 = vcmask 523264
          %v750 = vsel %vm748, %v744, 0
          %v753 = vsel %vm748, %v745, 0
          %v756 = vsel %vm748, %v746, 0
          %v759 = vsel %vm748, %v747, 0
          %761 = vmatpush.bf16.msra.mxu0 0
          %762 = vmatpush.bf16.msra.mxu0 0
          %763 = vmatpush.bf16.msra.mxu0 0
          %764 = vmatpush.bf16.msra.mxu0 0
          %765 = vmatpush.bf16.msra.mxu0 %v727
          %766 = vmatpush.bf16.msra.mxu0 %v726
          %767 = vmatpush.bf16.msra.mxu0 %v725
          %768 = vmatpush.bf16.msra.mxu0 %v724
          %769 = vmatmul.bf16.gmra.mxu0 %v750
          %v770 = vpop.f32.mrf.mxu0
          %v771 = vadd.f32 0.0, %v770
          %v772 = vpop.f32.mrf.mxu0
          %v773 = vadd.f32 0.0, %v772
          %774 = vmatmul.bf16.gmra.mxu0 %v753
          %v775 = vpop.f32.mrf.mxu0
          %v776 = vadd.f32 0.0, %v775
          %v777 = vpop.f32.mrf.mxu0
          %v778 = vadd.f32 0.0, %v777
          %779 = vmatmul.bf16.gmra.mxu0 %v756
          %v780 = vpop.f32.mrf.mxu0
          %v781 = vadd.f32 0.0, %v780
          %v782 = vpop.f32.mrf.mxu0
          %v783 = vadd.f32 0.0, %v782
          %784 = vmatmul.bf16.gmra.mxu0 %v759
          %v785 = vpop.f32.mrf.mxu0
          %v786 = vadd.f32 0.0, %v785
          %v787 = vpop.f32.mrf.mxu0
          %v788 = vadd.f32 0.0, %v787
          %789 = vdwg.mxu0
          %v790 = vsel %vm398, %v771, 0.0
          %791 = vadd.xlane.f32.xlu0 %v790
          %v792 = vpop.xlane.xlu0 %791
          %v793 = vsel %vm398, %v773, 0.0
          %794 = vadd.xlane.f32.xlu0 %v793
          %v795 = vpop.xlane.xlu0 %794
          %v796 = vsel %vm398, %v776, 0.0
          %797 = vadd.xlane.f32.xlu0 %v796
          %v798 = vpop.xlane.xlu0 %797
          %v799 = vsel %vm398, %v778, 0.0
          %800 = vadd.xlane.f32.xlu0 %v799
          %v801 = vpop.xlane.xlu0 %800
          %v802 = vsel %vm398, %v781, 0.0
          %803 = vadd.xlane.f32.xlu0 %v802
          %v804 = vpop.xlane.xlu0 %803
          %v805 = vsel %vm398, %v783, 0.0
          %806 = vadd.xlane.f32.xlu0 %v805
          %v807 = vpop.xlane.xlu0 %806
          %v808 = vsel %vm398, %v786, 0.0
          %809 = vadd.xlane.f32.xlu0 %v808
          %v810 = vpop.xlane.xlu0 %809
          %v811 = vsel %vm398, %v788, 0.0
          %812 = vadd.xlane.f32.xlu0 %v811
          %v813 = vpop.xlane.xlu0 %812
          %v814 = vrcp.pop 4.0
          %v815 = vmul.f32 4.0, %v814
          %v816 = vsub.f32 1.0, %v815
          %v817 = vmul.f32 %v814, %v816
          %v818 = vadd.f32 %v814, %v817
          %vm819 = vweird.f32 %v814
          %v820 = vsel %vm819, %v814, %v818
          %v821 = vmul.f32 %v792, %v820
          %v822 = vmul.f32 %v795, %v820
          %v823 = vmul.f32 %v798, %v820
          %v824 = vmul.f32 %v801, %v820
          %v825 = vmul.f32 %v804, %v820
          %v826 = vmul.f32 %v807, %v820
          %v827 = vmul.f32 %v810, %v820
          %v828 = vmul.f32 %v813, %v820
          %v829 = vsub.f32 %v771, %v821
          %v830 = vsub.f32 %v773, %v822
          %v831 = vsub.f32 %v776, %v823
          %v832 = vsub.f32 %v778, %v824
          %v833 = vsub.f32 %v781, %v825
          %v834 = vsub.f32 %v783, %v826
          %v835 = vsub.f32 %v786, %v827
          %v836 = vsub.f32 %v788, %v828
          %v837 = vmul.f32 %v829, %v829
          %v838 = vmul.f32 %v830, %v830
          %v839 = vmul.f32 %v831, %v831
          %v840 = vmul.f32 %v832, %v832
          %v841 = vmul.f32 %v833, %v833
          %v842 = vmul.f32 %v834, %v834
          %v843 = vmul.f32 %v835, %v835
          %v844 = vmul.f32 %v836, %v836
          %v845 = vsel %vm398, %v837, 0.0
          %846 = vadd.xlane.f32.xlu0 %v845
          %v847 = vpop.xlane.xlu0 %846
          %v848 = vsel %vm398, %v838, 0.0
          %849 = vadd.xlane.f32.xlu0 %v848
          %v850 = vpop.xlane.xlu0 %849
          %v851 = vsel %vm398, %v839, 0.0
          %852 = vadd.xlane.f32.xlu0 %v851
          %v853 = vpop.xlane.xlu0 %852
          %v854 = vsel %vm398, %v840, 0.0
          %855 = vadd.xlane.f32.xlu0 %v854
          %v856 = vpop.xlane.xlu0 %855
          %v857 = vsel %vm398, %v841, 0.0
          %858 = vadd.xlane.f32.xlu0 %v857
          %v859 = vpop.xlane.xlu0 %858
          %v860 = vsel %vm398, %v842, 0.0
          %861 = vadd.xlane.f32.xlu0 %v860
          %v862 = vpop.xlane.xlu0 %861
          %v863 = vsel %vm398, %v843, 0.0
          %864 = vadd.xlane.f32.xlu0 %v863
          %v865 = vpop.xlane.xlu0 %864
          %v866 = vsel %vm398, %v844, 0.0
          %867 = vadd.xlane.f32.xlu0 %v866
          %v868 = vpop.xlane.xlu0 %867
          %v869 = vmul.f32 %v847, %v820
          %v870 = vmul.f32 %v850, %v820
          %v871 = vmul.f32 %v853, %v820
          %v872 = vmul.f32 %v856, %v820
          %v873 = vmul.f32 %v859, %v820
          %v874 = vmul.f32 %v862, %v820
          %v875 = vmul.f32 %v865, %v820
          %v876 = vmul.f32 %v868, %v820
          %v877 = vadd.f32 %v869, 1e-05
          %v878 = vadd.f32 %v870, 1e-05
          %v879 = vadd.f32 %v871, 1e-05
          %v880 = vadd.f32 %v872, 1e-05
          %v881 = vadd.f32 %v873, 1e-05
          %v882 = vadd.f32 %v874, 1e-05
          %v883 = vadd.f32 %v875, 1e-05
          %v884 = vadd.f32 %v876, 1e-05
          %v885 = vrsqrt.pop %v877
          %v886 = vmul.f32 %v885, %v877
          %v887 = vmul.f32 %v886, %v885
          %v888 = vmul.f32 0.5, %v887
          %v889 = vsub.f32 1.5, %v888
          %v890 = vmul.f32 %v885, %v889
          %vm891 = vweird.f32 %v877
          %vm892 = vweird.f32 %v885
          %vm893 = vmor %vm891, %vm892
          %v894 = vsel %vm893, %v885, %v890
          %v895 = vrsqrt.pop %v878
          %v896 = vmul.f32 %v895, %v878
          %v897 = vmul.f32 %v896, %v895
          %v898 = vmul.f32 0.5, %v897
          %v899 = vsub.f32 1.5, %v898
          %v900 = vmul.f32 %v895, %v899
          %vm901 = vweird.f32 %v878
          %vm902 = vweird.f32 %v895
          %vm903 = vmor %vm901, %vm902
          %v904 = vsel %vm903, %v895, %v900
          %v905 = vrsqrt.pop %v879
          %v906 = vmul.f32 %v905, %v879
          %v907 = vmul.f32 %v906, %v905
          %v908 = vmul.f32 0.5, %v907
          %v909 = vsub.f32 1.5, %v908
          %v910 = vmul.f32 %v905, %v909
          %vm911 = vweird.f32 %v879
          %vm912 = vweird.f32 %v905
          %vm913 = vmor %vm911, %vm912
          %v914 = vsel %vm913, %v905, %v910
          %v915 = vrsqrt.pop %v880
          %v916 = vmul.f32 %v915, %v880
          %v917 = vmul.f32 %v916, %v915
          %v918 = vmul.f32 0.5, %v917
          %v919 = vsub.f32 1.5, %v918
          %v920 = vmul.f32 %v915, %v919
          %vm921 = vweird.f32 %v880
          %vm922 = vweird.f32 %v915
          %vm923 = vmor %vm921, %vm922
          %v924 = vsel %vm923, %v915, %v920
          %v925 = vrsqrt.pop %v881
          %v926 = vmul.f32 %v925, %v881
          %v927 = vmul.f32 %v926, %v925
          %v928 = vmul.f32 0.5, %v927
          %v929 = vsub.f32 1.5, %v928
          %v930 = vmul.f32 %v925, %v929
          %vm931 = vweird.f32 %v881
          %vm932 = vweird.f32 %v925
          %vm933 = vmor %vm931, %vm932
          %v934 = vsel %vm933, %v925, %v930
          %v935 = vrsqrt.pop %v882
          %v936 = vmul.f32 %v935, %v882
          %v937 = vmul.f32 %v936, %v935
          %v938 = vmul.f32 0.5, %v937
          %v939 = vsub.f32 1.5, %v938
          %v940 = vmul.f32 %v935, %v939
          %vm941 = vweird.f32 %v882
          %vm942 = vweird.f32 %v935
          %vm943 = vmor %vm941, %vm942
          %v944 = vsel %vm943, %v935, %v940
          %v945 = vrsqrt.pop %v883
          %v946 = vmul.f32 %v945, %v883
          %v947 = vmul.f32 %v946, %v945
          %v948 = vmul.f32 0.5, %v947
          %v949 = vsub.f32 1.5, %v948
          %v950 = vmul.f32 %v945, %v949
          %vm951 = vweird.f32 %v883
          %vm952 = vweird.f32 %v945
          %vm953 = vmor %vm951, %vm952
          %v954 = vsel %vm953, %v945, %v950
          %v955 = vrsqrt.pop %v884
          %v956 = vmul.f32 %v955, %v884
          %v957 = vmul.f32 %v956, %v955
          %v958 = vmul.f32 0.5, %v957
          %v959 = vsub.f32 1.5, %v958
          %v960 = vmul.f32 %v955, %v959
          %vm961 = vweird.f32 %v884
          %vm962 = vweird.f32 %v955
          %vm963 = vmor %vm961, %vm962
          %v964 = vsel %vm963, %v955, %v960
          %v965 = vmul.f32 %v829, %v894
          %v966 = vmul.f32 %v830, %v904
          %v967 = vmul.f32 %v831, %v914
          %v968 = vmul.f32 %v832, %v924
          %v969 = vmul.f32 %v833, %v934
          %v970 = vmul.f32 %v834, %v944
          %v971 = vmul.f32 %v835, %v954
          %v972 = vmul.f32 %v836, %v964
          %974 = vset.pattern.permute.xlu0 0
          %975 = vperm.xlu0 %974, %v692
          %v976 = vpop.permute.xlu0 %975
          %979 = vset.pattern.permute.xlu0 0
          %980 = vperm.xlu0 %979, %v693
          %v981 = vpop.permute.xlu0 %980
          %984 = vset.pattern.permute.xlu0 0
          %985 = vperm.xlu0 %984, %v694
          %v986 = vpop.permute.xlu0 %985
          %989 = vset.pattern.permute.xlu0 0
          %990 = vperm.xlu0 %989, %v695
          %v991 = vpop.permute.xlu0 %990
          %994 = vset.pattern.permute.xlu0 0
          %995 = vperm.xlu0 %994, %v696
          %v996 = vpop.permute.xlu0 %995
          %999 = vset.pattern.permute.xlu0 0
          %1000 = vperm.xlu0 %999, %v697
          %v1001 = vpop.permute.xlu0 %1000
          %1004 = vset.pattern.permute.xlu0 0
          %1005 = vperm.xlu0 %1004, %v698
          %v1006 = vpop.permute.xlu0 %1005
          %1009 = vset.pattern.permute.xlu0 0
          %1010 = vperm.xlu0 %1009, %v699
          %v1011 = vpop.permute.xlu0 %1010
          %v1013 = vmul.f32 %v965, %v976
          %v1014 = vmul.f32 %v966, %v981
          %v1015 = vmul.f32 %v967, %v986
          %v1016 = vmul.f32 %v968, %v991
          %v1017 = vmul.f32 %v969, %v996
          %v1018 = vmul.f32 %v970, %v1001
          %v1019 = vmul.f32 %v971, %v1006
          %v1020 = vmul.f32 %v972, %v1011
          %1021 = vset.pattern.permute.xlu0 1
          %1022 = vperm.xlu0 %1021, %v692
          %v1023 = vpop.permute.xlu0 %1022
          %1025 = vset.pattern.permute.xlu0 1
          %1026 = vperm.xlu0 %1025, %v693
          %v1027 = vpop.permute.xlu0 %1026
          %1029 = vset.pattern.permute.xlu0 1
          %1030 = vperm.xlu0 %1029, %v694
          %v1031 = vpop.permute.xlu0 %1030
          %1033 = vset.pattern.permute.xlu0 1
          %1034 = vperm.xlu0 %1033, %v695
          %v1035 = vpop.permute.xlu0 %1034
          %1037 = vset.pattern.permute.xlu0 1
          %1038 = vperm.xlu0 %1037, %v696
          %v1039 = vpop.permute.xlu0 %1038
          %1041 = vset.pattern.permute.xlu0 1
          %1042 = vperm.xlu0 %1041, %v697
          %v1043 = vpop.permute.xlu0 %1042
          %1045 = vset.pattern.permute.xlu0 1
          %1046 = vperm.xlu0 %1045, %v698
          %v1047 = vpop.permute.xlu0 %1046
          %1049 = vset.pattern.permute.xlu0 1
          %1050 = vperm.xlu0 %1049, %v699
          %v1051 = vpop.permute.xlu0 %1050
          %v1053 = vadd.f32 %v1013, %v1023
          %v1054 = vadd.f32 %v1014, %v1027
          %v1055 = vadd.f32 %v1015, %v1031
          %v1056 = vadd.f32 %v1016, %v1035
          %v1057 = vadd.f32 %v1017, %v1039
          %v1058 = vadd.f32 %v1018, %v1043
          %v1059 = vadd.f32 %v1019, %v1047
          %v1060 = vadd.f32 %v1020, %v1051
          %v1061 = vmax.f32 %v1053, 0.0
          %v1062 = vmax.f32 %v1054, 0.0
          %v1063 = vmax.f32 %v1055, 0.0
          %v1064 = vmax.f32 %v1056, 0.0
          %v1065 = vmax.f32 %v1057, 0.0
          %v1066 = vmax.f32 %v1058, 0.0
          %v1067 = vmax.f32 %v1059, 0.0
          %v1068 = vmax.f32 %v1060, 0.0
          %v1069 = vld [vmem:[%s5] sm:$0xf]
          %v1070 = vld [vmem:[%s5 + $0x4] sm:$0xf]
          %v1071 = vld [vmem:[%s5 + $0x8] sm:$0xf]
          %v1072 = vld [vmem:[%s5 + $0xc] sm:$0xf]
          %v1073 = vld [vmem:[%s5 + $0x10] sm:$0xf]
          %v1074 = vld [vmem:[%s5 + $0x14] sm:$0xf]
          %v1075 = vld [vmem:[%s5 + $0x18] sm:$0xf]
          %v1076 = vld [vmem:[%s5 + $0x1c] sm:$0xf]
          %v1077 = vpack.c.bf16 %v1062, %v1061
          %v1078 = vpack.c.bf16 %v1064, %v1063
          %v1079 = vpack.c.bf16 %v1066, %v1065
          %v1080 = vpack.c.bf16 %v1068, %v1067
          %v1089 = vunpack.c.l.b16 %v1069
          %v1090 = vunpack.c.l.b16 %v1070
          %v1091 = vunpack.c.l.b16 %v1071
          %v1092 = vunpack.c.l.b16 %v1072
          %v1093 = vunpack.c.l.b16 %v1073
          %v1094 = vunpack.c.l.b16 %v1074
          %v1095 = vunpack.c.l.b16 %v1075
          %v1096 = vunpack.c.l.b16 %v1076
          %v1097 = vpack.c.b16 %v1090, %v1089
          %v1098 = vpack.c.b16 %v1092, %v1091
          %v1099 = vpack.c.b16 %v1094, %v1093
          %v1100 = vpack.c.b16 %v1096, %v1095
          %v1102 = vsel %vm748, %v1097, 0
          %v1105 = vsel %vm748, %v1098, 0
          %v1108 = vsel %vm748, %v1099, 0
          %v1111 = vsel %vm748, %v1100, 0
          %1113 = vmatpush.bf16.msra.mxu0 0
          %1114 = vmatpush.bf16.msra.mxu0 0
          %1115 = vmatpush.bf16.msra.mxu0 0
          %1116 = vmatpush.bf16.msra.mxu0 0
          %1117 = vmatpush.bf16.msra.mxu0 %v1080
          %1118 = vmatpush.bf16.msra.mxu0 %v1079
          %1119 = vmatpush.bf16.msra.mxu0 %v1078
          %1120 = vmatpush.bf16.msra.mxu0 %v1077
          %1121 = vmatmul.bf16.gmra.mxu0 %v1102
          %v1122 = vpop.f32.mrf.mxu0
          %v1123 = vadd.f32 0.0, %v1122
          %v1124 = vpop.f32.mrf.mxu0
          %v1125 = vadd.f32 0.0, %v1124
          %1126 = vmatmul.bf16.gmra.mxu0 %v1105
          %v1127 = vpop.f32.mrf.mxu0
          %v1128 = vadd.f32 0.0, %v1127
          %v1129 = vpop.f32.mrf.mxu0
          %v1130 = vadd.f32 0.0, %v1129
          %1131 = vmatmul.bf16.gmra.mxu0 %v1108
          %v1132 = vpop.f32.mrf.mxu0
          %v1133 = vadd.f32 0.0, %v1132
          %v1134 = vpop.f32.mrf.mxu0
          %v1135 = vadd.f32 0.0, %v1134
          %1136 = vmatmul.bf16.gmra.mxu0 %v1111
          %v1137 = vpop.f32.mrf.mxu0
          %v1138 = vadd.f32 0.0, %v1137
          %v1139 = vpop.f32.mrf.mxu0
          %v1140 = vadd.f32 0.0, %v1139
          %1141 = vdwg.mxu0
          %v1142 = vsel %vm398, %v1123, 0.0
          %1143 = vadd.xlane.f32.xlu0 %v1142
          %v1144 = vpop.xlane.xlu0 %1143
          %v1145 = vsel %vm398, %v1125, 0.0
          %1146 = vadd.xlane.f32.xlu0 %v1145
          %v1147 = vpop.xlane.xlu0 %1146
          %v1148 = vsel %vm398, %v1128, 0.0
          %1149 = vadd.xlane.f32.xlu0 %v1148
          %v1150 = vpop.xlane.xlu0 %1149
          %v1151 = vsel %vm398, %v1130, 0.0
          %1152 = vadd.xlane.f32.xlu0 %v1151
          %v1153 = vpop.xlane.xlu0 %1152
          %v1154 = vsel %vm398, %v1133, 0.0
          %1155 = vadd.xlane.f32.xlu0 %v1154
          %v1156 = vpop.xlane.xlu0 %1155
          %v1157 = vsel %vm398, %v1135, 0.0
          %1158 = vadd.xlane.f32.xlu0 %v1157
          %v1159 = vpop.xlane.xlu0 %1158
          %v1160 = vsel %vm398, %v1138, 0.0
          %1161 = vadd.xlane.f32.xlu0 %v1160
          %v1162 = vpop.xlane.xlu0 %1161
          %v1163 = vsel %vm398, %v1140, 0.0
          %1164 = vadd.xlane.f32.xlu0 %v1163
          %v1165 = vpop.xlane.xlu0 %1164
          %v1166 = vmul.f32 %v1144, %v820
          %v1167 = vmul.f32 %v1147, %v820
          %v1168 = vmul.f32 %v1150, %v820
          %v1169 = vmul.f32 %v1153, %v820
          %v1170 = vmul.f32 %v1156, %v820
          %v1171 = vmul.f32 %v1159, %v820
          %v1172 = vmul.f32 %v1162, %v820
          %v1173 = vmul.f32 %v1165, %v820
          %v1174 = vsub.f32 %v1123, %v1166
          %v1175 = vsub.f32 %v1125, %v1167
          %v1176 = vsub.f32 %v1128, %v1168
          %v1177 = vsub.f32 %v1130, %v1169
          %v1178 = vsub.f32 %v1133, %v1170
          %v1179 = vsub.f32 %v1135, %v1171
          %v1180 = vsub.f32 %v1138, %v1172
          %v1181 = vsub.f32 %v1140, %v1173
          %v1182 = vmul.f32 %v1174, %v1174
          %v1183 = vmul.f32 %v1175, %v1175
          %v1184 = vmul.f32 %v1176, %v1176
          %v1185 = vmul.f32 %v1177, %v1177
          %v1186 = vmul.f32 %v1178, %v1178
          %v1187 = vmul.f32 %v1179, %v1179
          %v1188 = vmul.f32 %v1180, %v1180
          %v1189 = vmul.f32 %v1181, %v1181
          %v1190 = vsel %vm398, %v1182, 0.0
          %1191 = vadd.xlane.f32.xlu0 %v1190
          %v1192 = vpop.xlane.xlu0 %1191
          %v1193 = vsel %vm398, %v1183, 0.0
          %1194 = vadd.xlane.f32.xlu0 %v1193
          %v1195 = vpop.xlane.xlu0 %1194
          %v1196 = vsel %vm398, %v1184, 0.0
          %1197 = vadd.xlane.f32.xlu0 %v1196
          %v1198 = vpop.xlane.xlu0 %1197
          %v1199 = vsel %vm398, %v1185, 0.0
          %1200 = vadd.xlane.f32.xlu0 %v1199
          %v1201 = vpop.xlane.xlu0 %1200
          %v1202 = vsel %vm398, %v1186, 0.0
          %1203 = vadd.xlane.f32.xlu0 %v1202
          %v1204 = vpop.xlane.xlu0 %1203
          %v1205 = vsel %vm398, %v1187, 0.0
          %1206 = vadd.xlane.f32.xlu0 %v1205
          %v1207 = vpop.xlane.xlu0 %1206
          %v1208 = vsel %vm398, %v1188, 0.0
          %1209 = vadd.xlane.f32.xlu0 %v1208
          %v1210 = vpop.xlane.xlu0 %1209
          %v1211 = vsel %vm398, %v1189, 0.0
          %1212 = vadd.xlane.f32.xlu0 %v1211
          %v1213 = vpop.xlane.xlu0 %1212
          %v1214 = vmul.f32 %v1192, %v820
          %v1215 = vmul.f32 %v1195, %v820
          %v1216 = vmul.f32 %v1198, %v820
          %v1217 = vmul.f32 %v1201, %v820
          %v1218 = vmul.f32 %v1204, %v820
          %v1219 = vmul.f32 %v1207, %v820
          %v1220 = vmul.f32 %v1210, %v820
          %v1221 = vmul.f32 %v1213, %v820
          %v1222 = vadd.f32 %v1214, 1e-05
          %v1223 = vadd.f32 %v1215, 1e-05
          %v1224 = vadd.f32 %v1216, 1e-05
          %v1225 = vadd.f32 %v1217, 1e-05
          %v1226 = vadd.f32 %v1218, 1e-05
          %v1227 = vadd.f32 %v1219, 1e-05
          %v1228 = vadd.f32 %v1220, 1e-05
          %v1229 = vadd.f32 %v1221, 1e-05
          %v1230 = vrsqrt.pop %v1222
          %v1231 = vmul.f32 %v1230, %v1222
          %v1232 = vmul.f32 %v1231, %v1230
          %v1233 = vmul.f32 0.5, %v1232
          %v1234 = vsub.f32 1.5, %v1233
          %v1235 = vmul.f32 %v1230, %v1234
          %vm1236 = vweird.f32 %v1222
          %vm1237 = vweird.f32 %v1230
          %vm1238 = vmor %vm1236, %vm1237
          %v1239 = vsel %vm1238, %v1230, %v1235
          %v1240 = vrsqrt.pop %v1223
          %v1241 = vmul.f32 %v1240, %v1223
          %v1242 = vmul.f32 %v1241, %v1240
          %v1243 = vmul.f32 0.5, %v1242
          %v1244 = vsub.f32 1.5, %v1243
          %v1245 = vmul.f32 %v1240, %v1244
          %vm1246 = vweird.f32 %v1223
          %vm1247 = vweird.f32 %v1240
          %vm1248 = vmor %vm1246, %vm1247
          %v1249 = vsel %vm1248, %v1240, %v1245
          %v1250 = vrsqrt.pop %v1224
          %v1251 = vmul.f32 %v1250, %v1224
          %v1252 = vmul.f32 %v1251, %v1250
          %v1253 = vmul.f32 0.5, %v1252
          %v1254 = vsub.f32 1.5, %v1253
          %v1255 = vmul.f32 %v1250, %v1254
          %vm1256 = vweird.f32 %v1224
          %vm1257 = vweird.f32 %v1250
          %vm1258 = vmor %vm1256, %vm1257
          %v1259 = vsel %vm1258, %v1250, %v1255
          %v1260 = vrsqrt.pop %v1225
          %v1261 = vmul.f32 %v1260, %v1225
          %v1262 = vmul.f32 %v1261, %v1260
          %v1263 = vmul.f32 0.5, %v1262
          %v1264 = vsub.f32 1.5, %v1263
          %v1265 = vmul.f32 %v1260, %v1264
          %vm1266 = vweird.f32 %v1225
          %vm1267 = vweird.f32 %v1260
          %vm1268 = vmor %vm1266, %vm1267
          %v1269 = vsel %vm1268, %v1260, %v1265
          %v1270 = vrsqrt.pop %v1226
          %v1271 = vmul.f32 %v1270, %v1226
          %v1272 = vmul.f32 %v1271, %v1270
          %v1273 = vmul.f32 0.5, %v1272
          %v1274 = vsub.f32 1.5, %v1273
          %v1275 = vmul.f32 %v1270, %v1274
          %vm1276 = vweird.f32 %v1226
          %vm1277 = vweird.f32 %v1270
          %vm1278 = vmor %vm1276, %vm1277
          %v1279 = vsel %vm1278, %v1270, %v1275
          %v1280 = vrsqrt.pop %v1227
          %v1281 = vmul.f32 %v1280, %v1227
          %v1282 = vmul.f32 %v1281, %v1280
          %v1283 = vmul.f32 0.5, %v1282
          %v1284 = vsub.f32 1.5, %v1283
          %v1285 = vmul.f32 %v1280, %v1284
          %vm1286 = vweird.f32 %v1227
          %vm1287 = vweird.f32 %v1280
          %vm1288 = vmor %vm1286, %vm1287
          %v1289 = vsel %vm1288, %v1280, %v1285
          %v1290 = vrsqrt.pop %v1228
          %v1291 = vmul.f32 %v1290, %v1228
          %v1292 = vmul.f32 %v1291, %v1290
          %v1293 = vmul.f32 0.5, %v1292
          %v1294 = vsub.f32 1.5, %v1293
          %v1295 = vmul.f32 %v1290, %v1294
          %vm1296 = vweird.f32 %v1228
          %vm1297 = vweird.f32 %v1290
          %vm1298 = vmor %vm1296, %vm1297
          %v1299 = vsel %vm1298, %v1290, %v1295
          %v1300 = vrsqrt.pop %v1229
          %v1301 = vmul.f32 %v1300, %v1229
          %v1302 = vmul.f32 %v1301, %v1300
          %v1303 = vmul.f32 0.5, %v1302
          %v1304 = vsub.f32 1.5, %v1303
          %v1305 = vmul.f32 %v1300, %v1304
          %vm1306 = vweird.f32 %v1229
          %vm1307 = vweird.f32 %v1300
          %vm1308 = vmor %vm1306, %vm1307
          %v1309 = vsel %vm1308, %v1300, %v1305
          %v1310 = vmul.f32 %v1174, %v1239
          %v1311 = vmul.f32 %v1175, %v1249
          %v1312 = vmul.f32 %v1176, %v1259
          %v1313 = vmul.f32 %v1177, %v1269
          %v1314 = vmul.f32 %v1178, %v1279
          %v1315 = vmul.f32 %v1179, %v1289
          %v1316 = vmul.f32 %v1180, %v1299
          %v1317 = vmul.f32 %v1181, %v1309
          %1318 = vset.pattern.permute.xlu0 2
          %1319 = vperm.xlu0 %1318, %v692
          %v1320 = vpop.permute.xlu0 %1319
          %1322 = vset.pattern.permute.xlu0 2
          %1323 = vperm.xlu0 %1322, %v693
          %v1324 = vpop.permute.xlu0 %1323
          %1326 = vset.pattern.permute.xlu0 2
          %1327 = vperm.xlu0 %1326, %v694
          %v1328 = vpop.permute.xlu0 %1327
          %1330 = vset.pattern.permute.xlu0 2
          %1331 = vperm.xlu0 %1330, %v695
          %v1332 = vpop.permute.xlu0 %1331
          %1334 = vset.pattern.permute.xlu0 2
          %1335 = vperm.xlu0 %1334, %v696
          %v1336 = vpop.permute.xlu0 %1335
          %1338 = vset.pattern.permute.xlu0 2
          %1339 = vperm.xlu0 %1338, %v697
          %v1340 = vpop.permute.xlu0 %1339
          %1342 = vset.pattern.permute.xlu0 2
          %1343 = vperm.xlu0 %1342, %v698
          %v1344 = vpop.permute.xlu0 %1343
          %1346 = vset.pattern.permute.xlu0 2
          %1347 = vperm.xlu0 %1346, %v699
          %v1348 = vpop.permute.xlu0 %1347
          %v1350 = vmul.f32 %v1310, %v1320
          %v1351 = vmul.f32 %v1311, %v1324
          %v1352 = vmul.f32 %v1312, %v1328
          %v1353 = vmul.f32 %v1313, %v1332
          %v1354 = vmul.f32 %v1314, %v1336
          %v1355 = vmul.f32 %v1315, %v1340
          %v1356 = vmul.f32 %v1316, %v1344
          %v1357 = vmul.f32 %v1317, %v1348
          %1358 = vset.pattern.permute.xlu0 3
          %1359 = vperm.xlu0 %1358, %v692
          %v1360 = vpop.permute.xlu0 %1359
          %1362 = vset.pattern.permute.xlu0 3
          %1363 = vperm.xlu0 %1362, %v693
          %v1364 = vpop.permute.xlu0 %1363
          %1366 = vset.pattern.permute.xlu0 3
          %1367 = vperm.xlu0 %1366, %v694
          %v1368 = vpop.permute.xlu0 %1367
          %1370 = vset.pattern.permute.xlu0 3
          %1371 = vperm.xlu0 %1370, %v695
          %v1372 = vpop.permute.xlu0 %1371
          %1374 = vset.pattern.permute.xlu0 3
          %1375 = vperm.xlu0 %1374, %v696
          %v1376 = vpop.permute.xlu0 %1375
          %1378 = vset.pattern.permute.xlu0 3
          %1379 = vperm.xlu0 %1378, %v697
          %v1380 = vpop.permute.xlu0 %1379
          %1382 = vset.pattern.permute.xlu0 3
          %1383 = vperm.xlu0 %1382, %v698
          %v1384 = vpop.permute.xlu0 %1383
          %1386 = vset.pattern.permute.xlu0 3
          %1387 = vperm.xlu0 %1386, %v699
          %v1388 = vpop.permute.xlu0 %1387
          %v1390 = vadd.f32 %v1350, %v1360
          %v1391 = vadd.f32 %v1351, %v1364
          %v1392 = vadd.f32 %v1352, %v1368
          %v1393 = vadd.f32 %v1353, %v1372
          %v1394 = vadd.f32 %v1354, %v1376
          %v1395 = vadd.f32 %v1355, %v1380
          %v1396 = vadd.f32 %v1356, %v1384
          %v1397 = vadd.f32 %v1357, %v1388
          %v1398 = vmax.f32 %v1390, 0.0
          %v1399 = vmax.f32 %v1391, 0.0
          %v1400 = vmax.f32 %v1392, 0.0
          %v1401 = vmax.f32 %v1393, 0.0
          %v1402 = vmax.f32 %v1394, 0.0
          %v1403 = vmax.f32 %v1395, 0.0
          %v1404 = vmax.f32 %v1396, 0.0
          %v1405 = vmax.f32 %v1397, 0.0
          %v1406 = vld [vmem:[%s6] sm:$0xf]
          %v1407 = vld [vmem:[%s6 + $0x4] sm:$0xf]
          %v1408 = vld [vmem:[%s6 + $0x8] sm:$0xf]
          %v1409 = vld [vmem:[%s6 + $0xc] sm:$0xf]
          %v1410 = vld [vmem:[%s6 + $0x10] sm:$0xf]
          %v1411 = vld [vmem:[%s6 + $0x14] sm:$0xf]
          %v1412 = vld [vmem:[%s6 + $0x18] sm:$0xf]
          %v1413 = vld [vmem:[%s6 + $0x1c] sm:$0xf]
          %v1414 = vld [vmem:[%s6 + $0x20] sm:$0xf]
          %v1415 = vld [vmem:[%s6 + $0x24] sm:$0xf]
          %v1416 = vld [vmem:[%s6 + $0x28] sm:$0xf]
          %v1417 = vld [vmem:[%s6 + $0x2c] sm:$0xf]
          %v1418 = vld [vmem:[%s6 + $0x30] sm:$0xf]
          %v1419 = vld [vmem:[%s6 + $0x34] sm:$0xf]
          %v1420 = vld [vmem:[%s6 + $0x38] sm:$0xf]
          %v1421 = vld [vmem:[%s6 + $0x3c] sm:$0xf]
          %v1422 = vpack.c.bf16 %v1399, %v1398
          %v1423 = vpack.c.bf16 %v1401, %v1400
          %v1424 = vpack.c.bf16 %v1403, %v1402
          %v1425 = vpack.c.bf16 %v1405, %v1404
          %v1442 = vunpack.c.l.b16 %v1406
          %v1443 = vunpack.c.l.b16 %v1407
          %v1444 = vunpack.c.l.b16 %v1408
          %v1445 = vunpack.c.l.b16 %v1409
          %v1446 = vunpack.c.l.b16 %v1410
          %v1447 = vunpack.c.l.b16 %v1411
          %v1448 = vunpack.c.l.b16 %v1412
          %v1449 = vunpack.c.l.b16 %v1413
          %v1450 = vunpack.c.l.b16 %v1414
          %v1451 = vunpack.c.l.b16 %v1415
          %v1452 = vunpack.c.l.b16 %v1416
          %v1453 = vunpack.c.l.b16 %v1417
          %v1454 = vunpack.c.l.b16 %v1418
          %v1455 = vunpack.c.l.b16 %v1419
          %v1456 = vunpack.c.l.b16 %v1420
          %v1457 = vunpack.c.l.b16 %v1421
          %v1458 = vpack.c.b16 %v1443, %v1442
          %v1459 = vpack.c.b16 %v1445, %v1444
          %v1460 = vpack.c.b16 %v1447, %v1446
          %v1461 = vpack.c.b16 %v1449, %v1448
          %v1462 = vpack.c.b16 %v1451, %v1450
          %v1463 = vpack.c.b16 %v1453, %v1452
          %v1464 = vpack.c.b16 %v1455, %v1454
          %v1465 = vpack.c.b16 %v1457, %v1456
          %v1467 = vsel %vm748, %v1458, 0
          %v1470 = vsel %vm748, %v1459, 0
          %v1473 = vsel %vm748, %v1460, 0
          %v1476 = vsel %vm748, %v1461, 0
          %v1479 = vsel %vm748, %v1462, 0
          %v1482 = vsel %vm748, %v1463, 0
          %v1485 = vsel %vm748, %v1464, 0
          %v1488 = vsel %vm748, %v1465, 0
          %1490 = vmatpush.bf16.msra.mxu0 0
          %1491 = vmatpush.bf16.msra.mxu0 0
          %1492 = vmatpush.bf16.msra.mxu0 0
          %1493 = vmatpush.bf16.msra.mxu0 0
          %1494 = vmatpush.bf16.msra.mxu0 %v1425
          %1495 = vmatpush.bf16.msra.mxu0 %v1424
          %1496 = vmatpush.bf16.msra.mxu0 %v1423
          %1497 = vmatpush.bf16.msra.mxu0 %v1422
          %1498 = vmatmul.bf16.gmra.mxu0 %v1467
          %v1499 = vpop.f32.mrf.mxu0
          %v1500 = vadd.f32 0.0, %v1499
          %v1501 = vpop.f32.mrf.mxu0
          %v1502 = vadd.f32 0.0, %v1501
          %1503 = vmatmul.bf16.gmra.mxu0 %v1470
          %v1504 = vpop.f32.mrf.mxu0
          %v1505 = vadd.f32 0.0, %v1504
          %v1506 = vpop.f32.mrf.mxu0
          %v1507 = vadd.f32 0.0, %v1506
          %1508 = vmatmul.bf16.gmra.mxu0 %v1473
          %v1509 = vpop.f32.mrf.mxu0
          %v1510 = vadd.f32 0.0, %v1509
          %v1511 = vpop.f32.mrf.mxu0
          %v1512 = vadd.f32 0.0, %v1511
          %1513 = vmatmul.bf16.gmra.mxu0 %v1476
          %v1514 = vpop.f32.mrf.mxu0
          %v1515 = vadd.f32 0.0, %v1514
          %v1516 = vpop.f32.mrf.mxu0
          %v1517 = vadd.f32 0.0, %v1516
          %1518 = vmatmul.bf16.gmra.mxu0 %v1479
          %v1519 = vpop.f32.mrf.mxu0
          %v1520 = vadd.f32 0.0, %v1519
          %v1521 = vpop.f32.mrf.mxu0
          %v1522 = vadd.f32 0.0, %v1521
          %1523 = vmatmul.bf16.gmra.mxu0 %v1482
          %v1524 = vpop.f32.mrf.mxu0
          %v1525 = vadd.f32 0.0, %v1524
          %v1526 = vpop.f32.mrf.mxu0
          %v1527 = vadd.f32 0.0, %v1526
          %1528 = vmatmul.bf16.gmra.mxu0 %v1485
          %v1529 = vpop.f32.mrf.mxu0
          %v1530 = vadd.f32 0.0, %v1529
          %v1531 = vpop.f32.mrf.mxu0
          %v1532 = vadd.f32 0.0, %v1531
          %1533 = vmatmul.bf16.gmra.mxu0 %v1488
          %v1534 = vpop.f32.mrf.mxu0
          %v1535 = vadd.f32 0.0, %v1534
          %v1536 = vpop.f32.mrf.mxu0
          %v1537 = vadd.f32 0.0, %v1536
          %1538 = vdwg.mxu0
          %v1539 = vsel %vm398, %v1500, 0.0
          %1540 = vadd.xlane.f32.xlu0 %v1539
          %v1541 = vpop.xlane.xlu0 %1540
          %v1542 = vsel %vm398, %v1502, 0.0
          %1543 = vadd.xlane.f32.xlu0 %v1542
          %v1544 = vpop.xlane.xlu0 %1543
          %v1545 = vsel %vm398, %v1505, 0.0
          %1546 = vadd.xlane.f32.xlu0 %v1545
          %v1547 = vpop.xlane.xlu0 %1546
          %v1548 = vsel %vm398, %v1507, 0.0
          %1549 = vadd.xlane.f32.xlu0 %v1548
          %v1550 = vpop.xlane.xlu0 %1549
          %v1551 = vsel %vm398, %v1510, 0.0
          %1552 = vadd.xlane.f32.xlu0 %v1551
          %v1553 = vpop.xlane.xlu0 %1552
          %v1554 = vsel %vm398, %v1512, 0.0
          %1555 = vadd.xlane.f32.xlu0 %v1554
          %v1556 = vpop.xlane.xlu0 %1555
          %v1557 = vsel %vm398, %v1515, 0.0
          %1558 = vadd.xlane.f32.xlu0 %v1557
          %v1559 = vpop.xlane.xlu0 %1558
          %v1560 = vsel %vm398, %v1517, 0.0
          %1561 = vadd.xlane.f32.xlu0 %v1560
          %v1562 = vpop.xlane.xlu0 %1561
          %v1563 = vsel %vm398, %v1520, 0.0
          %1564 = vadd.xlane.f32.xlu0 %v1563
          %v1565 = vpop.xlane.xlu0 %1564
          %v1566 = vsel %vm398, %v1522, 0.0
          %1567 = vadd.xlane.f32.xlu0 %v1566
          %v1568 = vpop.xlane.xlu0 %1567
          %v1569 = vsel %vm398, %v1525, 0.0
          %1570 = vadd.xlane.f32.xlu0 %v1569
          %v1571 = vpop.xlane.xlu0 %1570
          %v1572 = vsel %vm398, %v1527, 0.0
          %1573 = vadd.xlane.f32.xlu0 %v1572
          %v1574 = vpop.xlane.xlu0 %1573
          %v1575 = vsel %vm398, %v1530, 0.0
          %1576 = vadd.xlane.f32.xlu0 %v1575
          %v1577 = vpop.xlane.xlu0 %1576
          %v1578 = vsel %vm398, %v1532, 0.0
          %1579 = vadd.xlane.f32.xlu0 %v1578
          %v1580 = vpop.xlane.xlu0 %1579
          %v1581 = vsel %vm398, %v1535, 0.0
          %1582 = vadd.xlane.f32.xlu0 %v1581
          %v1583 = vpop.xlane.xlu0 %1582
          %v1584 = vsel %vm398, %v1537, 0.0
          %1585 = vadd.xlane.f32.xlu0 %v1584
          %v1586 = vpop.xlane.xlu0 %1585
          %v1587 = vmul.f32 %v1541, %v820
          %v1588 = vmul.f32 %v1544, %v820
          %v1589 = vmul.f32 %v1547, %v820
          %v1590 = vmul.f32 %v1550, %v820
          %v1591 = vmul.f32 %v1553, %v820
          %v1592 = vmul.f32 %v1556, %v820
          %v1593 = vmul.f32 %v1559, %v820
          %v1594 = vmul.f32 %v1562, %v820
          %v1595 = vmul.f32 %v1565, %v820
          %v1596 = vmul.f32 %v1568, %v820
          %v1597 = vmul.f32 %v1571, %v820
          %v1598 = vmul.f32 %v1574, %v820
          %v1599 = vmul.f32 %v1577, %v820
          %v1600 = vmul.f32 %v1580, %v820
          %v1601 = vmul.f32 %v1583, %v820
          %v1602 = vmul.f32 %v1586, %v820
          %v1603 = vsub.f32 %v1500, %v1587
          %v1604 = vsub.f32 %v1502, %v1588
          %v1605 = vsub.f32 %v1505, %v1589
          %v1606 = vsub.f32 %v1507, %v1590
          %v1607 = vsub.f32 %v1510, %v1591
          %v1608 = vsub.f32 %v1512, %v1592
          %v1609 = vsub.f32 %v1515, %v1593
          %v1610 = vsub.f32 %v1517, %v1594
          %v1611 = vsub.f32 %v1520, %v1595
          %v1612 = vsub.f32 %v1522, %v1596
          %v1613 = vsub.f32 %v1525, %v1597
          %v1614 = vsub.f32 %v1527, %v1598
          %v1615 = vsub.f32 %v1530, %v1599
          %v1616 = vsub.f32 %v1532, %v1600
          %v1617 = vsub.f32 %v1535, %v1601
          %v1618 = vsub.f32 %v1537, %v1602
          %v1619 = vmul.f32 %v1603, %v1603
          %v1620 = vmul.f32 %v1604, %v1604
          %v1621 = vmul.f32 %v1605, %v1605
          %v1622 = vmul.f32 %v1606, %v1606
          %v1623 = vmul.f32 %v1607, %v1607
          %v1624 = vmul.f32 %v1608, %v1608
          %v1625 = vmul.f32 %v1609, %v1609
          %v1626 = vmul.f32 %v1610, %v1610
          %v1627 = vmul.f32 %v1611, %v1611
          %v1628 = vmul.f32 %v1612, %v1612
          %v1629 = vmul.f32 %v1613, %v1613
          %v1630 = vmul.f32 %v1614, %v1614
          %v1631 = vmul.f32 %v1615, %v1615
          %v1632 = vmul.f32 %v1616, %v1616
          %v1633 = vmul.f32 %v1617, %v1617
          %v1634 = vmul.f32 %v1618, %v1618
          %v1635 = vsel %vm398, %v1619, 0.0
          %1636 = vadd.xlane.f32.xlu0 %v1635
          %v1637 = vpop.xlane.xlu0 %1636
          %v1638 = vsel %vm398, %v1620, 0.0
          %1639 = vadd.xlane.f32.xlu0 %v1638
          %v1640 = vpop.xlane.xlu0 %1639
          %v1641 = vsel %vm398, %v1621, 0.0
          %1642 = vadd.xlane.f32.xlu0 %v1641
          %v1643 = vpop.xlane.xlu0 %1642
          %v1644 = vsel %vm398, %v1622, 0.0
          %1645 = vadd.xlane.f32.xlu0 %v1644
          %v1646 = vpop.xlane.xlu0 %1645
          %v1647 = vsel %vm398, %v1623, 0.0
          %1648 = vadd.xlane.f32.xlu0 %v1647
          %v1649 = vpop.xlane.xlu0 %1648
          %v1650 = vsel %vm398, %v1624, 0.0
          %1651 = vadd.xlane.f32.xlu0 %v1650
          %v1652 = vpop.xlane.xlu0 %1651
          %v1653 = vsel %vm398, %v1625, 0.0
          %1654 = vadd.xlane.f32.xlu0 %v1653
          %v1655 = vpop.xlane.xlu0 %1654
          %v1656 = vsel %vm398, %v1626, 0.0
          %1657 = vadd.xlane.f32.xlu0 %v1656
          %v1658 = vpop.xlane.xlu0 %1657
          %v1659 = vsel %vm398, %v1627, 0.0
          %1660 = vadd.xlane.f32.xlu0 %v1659
          %v1661 = vpop.xlane.xlu0 %1660
          %v1662 = vsel %vm398, %v1628, 0.0
          %1663 = vadd.xlane.f32.xlu0 %v1662
          %v1664 = vpop.xlane.xlu0 %1663
          %v1665 = vsel %vm398, %v1629, 0.0
          %1666 = vadd.xlane.f32.xlu0 %v1665
          %v1667 = vpop.xlane.xlu0 %1666
          %v1668 = vsel %vm398, %v1630, 0.0
          %1669 = vadd.xlane.f32.xlu0 %v1668
          %v1670 = vpop.xlane.xlu0 %1669
          %v1671 = vsel %vm398, %v1631, 0.0
          %1672 = vadd.xlane.f32.xlu0 %v1671
          %v1673 = vpop.xlane.xlu0 %1672
          %v1674 = vsel %vm398, %v1632, 0.0
          %1675 = vadd.xlane.f32.xlu0 %v1674
          %v1676 = vpop.xlane.xlu0 %1675
          %v1677 = vsel %vm398, %v1633, 0.0
          %1678 = vadd.xlane.f32.xlu0 %v1677
          %v1679 = vpop.xlane.xlu0 %1678
          %v1680 = vsel %vm398, %v1634, 0.0
          %1681 = vadd.xlane.f32.xlu0 %v1680
          %v1682 = vpop.xlane.xlu0 %1681
          %v1683 = vmul.f32 %v1637, %v820
          %v1684 = vmul.f32 %v1640, %v820
          %v1685 = vmul.f32 %v1643, %v820
          %v1686 = vmul.f32 %v1646, %v820
          %v1687 = vmul.f32 %v1649, %v820
          %v1688 = vmul.f32 %v1652, %v820
          %v1689 = vmul.f32 %v1655, %v820
          %v1690 = vmul.f32 %v1658, %v820
          %v1691 = vmul.f32 %v1661, %v820
          %v1692 = vmul.f32 %v1664, %v820
          %v1693 = vmul.f32 %v1667, %v820
          %v1694 = vmul.f32 %v1670, %v820
          %v1695 = vmul.f32 %v1673, %v820
          %v1696 = vmul.f32 %v1676, %v820
          %v1697 = vmul.f32 %v1679, %v820
          %v1698 = vmul.f32 %v1682, %v820
          %v1699 = vadd.f32 %v1683, 1e-05
          %v1700 = vadd.f32 %v1684, 1e-05
          %v1701 = vadd.f32 %v1685, 1e-05
          %v1702 = vadd.f32 %v1686, 1e-05
          %v1703 = vadd.f32 %v1687, 1e-05
          %v1704 = vadd.f32 %v1688, 1e-05
          %v1705 = vadd.f32 %v1689, 1e-05
          %v1706 = vadd.f32 %v1690, 1e-05
          %v1707 = vadd.f32 %v1691, 1e-05
          %v1708 = vadd.f32 %v1692, 1e-05
          %v1709 = vadd.f32 %v1693, 1e-05
          %v1710 = vadd.f32 %v1694, 1e-05
          %v1711 = vadd.f32 %v1695, 1e-05
          %v1712 = vadd.f32 %v1696, 1e-05
          %v1713 = vadd.f32 %v1697, 1e-05
          %v1714 = vadd.f32 %v1698, 1e-05
          %v1715 = vrsqrt.pop %v1699
          %v1716 = vmul.f32 %v1715, %v1699
          %v1717 = vmul.f32 %v1716, %v1715
          %v1718 = vmul.f32 0.5, %v1717
          %v1719 = vsub.f32 1.5, %v1718
          %v1720 = vmul.f32 %v1715, %v1719
          %vm1721 = vweird.f32 %v1699
          %vm1722 = vweird.f32 %v1715
          %vm1723 = vmor %vm1721, %vm1722
          %v1724 = vsel %vm1723, %v1715, %v1720
          %v1725 = vrsqrt.pop %v1700
          %v1726 = vmul.f32 %v1725, %v1700
          %v1727 = vmul.f32 %v1726, %v1725
          %v1728 = vmul.f32 0.5, %v1727
          %v1729 = vsub.f32 1.5, %v1728
          %v1730 = vmul.f32 %v1725, %v1729
          %vm1731 = vweird.f32 %v1700
          %vm1732 = vweird.f32 %v1725
          %vm1733 = vmor %vm1731, %vm1732
          %v1734 = vsel %vm1733, %v1725, %v1730
          %v1735 = vrsqrt.pop %v1701
          %v1736 = vmul.f32 %v1735, %v1701
          %v1737 = vmul.f32 %v1736, %v1735
          %v1738 = vmul.f32 0.5, %v1737
          %v1739 = vsub.f32 1.5, %v1738
          %v1740 = vmul.f32 %v1735, %v1739
          %vm1741 = vweird.f32 %v1701
          %vm1742 = vweird.f32 %v1735
          %vm1743 = vmor %vm1741, %vm1742
          %v1744 = vsel %vm1743, %v1735, %v1740
          %v1745 = vrsqrt.pop %v1702
          %v1746 = vmul.f32 %v1745, %v1702
          %v1747 = vmul.f32 %v1746, %v1745
          %v1748 = vmul.f32 0.5, %v1747
          %v1749 = vsub.f32 1.5, %v1748
          %v1750 = vmul.f32 %v1745, %v1749
          %vm1751 = vweird.f32 %v1702
          %vm1752 = vweird.f32 %v1745
          %vm1753 = vmor %vm1751, %vm1752
          %v1754 = vsel %vm1753, %v1745, %v1750
          %v1755 = vrsqrt.pop %v1703
          %v1756 = vmul.f32 %v1755, %v1703
          %v1757 = vmul.f32 %v1756, %v1755
          %v1758 = vmul.f32 0.5, %v1757
          %v1759 = vsub.f32 1.5, %v1758
          %v1760 = vmul.f32 %v1755, %v1759
          %vm1761 = vweird.f32 %v1703
          %vm1762 = vweird.f32 %v1755
          %vm1763 = vmor %vm1761, %vm1762
          %v1764 = vsel %vm1763, %v1755, %v1760
          %v1765 = vrsqrt.pop %v1704
          %v1766 = vmul.f32 %v1765, %v1704
          %v1767 = vmul.f32 %v1766, %v1765
          %v1768 = vmul.f32 0.5, %v1767
          %v1769 = vsub.f32 1.5, %v1768
          %v1770 = vmul.f32 %v1765, %v1769
          %vm1771 = vweird.f32 %v1704
          %vm1772 = vweird.f32 %v1765
          %vm1773 = vmor %vm1771, %vm1772
          %v1774 = vsel %vm1773, %v1765, %v1770
          %v1775 = vrsqrt.pop %v1705
          %v1776 = vmul.f32 %v1775, %v1705
          %v1777 = vmul.f32 %v1776, %v1775
          %v1778 = vmul.f32 0.5, %v1777
          %v1779 = vsub.f32 1.5, %v1778
          %v1780 = vmul.f32 %v1775, %v1779
          %vm1781 = vweird.f32 %v1705
          %vm1782 = vweird.f32 %v1775
          %vm1783 = vmor %vm1781, %vm1782
          %v1784 = vsel %vm1783, %v1775, %v1780
          %v1785 = vrsqrt.pop %v1706
          %v1786 = vmul.f32 %v1785, %v1706
          %v1787 = vmul.f32 %v1786, %v1785
          %v1788 = vmul.f32 0.5, %v1787
          %v1789 = vsub.f32 1.5, %v1788
          %v1790 = vmul.f32 %v1785, %v1789
          %vm1791 = vweird.f32 %v1706
          %vm1792 = vweird.f32 %v1785
          %vm1793 = vmor %vm1791, %vm1792
          %v1794 = vsel %vm1793, %v1785, %v1790
          %v1795 = vrsqrt.pop %v1707
          %v1796 = vmul.f32 %v1795, %v1707
          %v1797 = vmul.f32 %v1796, %v1795
          %v1798 = vmul.f32 0.5, %v1797
          %v1799 = vsub.f32 1.5, %v1798
          %v1800 = vmul.f32 %v1795, %v1799
          %vm1801 = vweird.f32 %v1707
          %vm1802 = vweird.f32 %v1795
          %vm1803 = vmor %vm1801, %vm1802
          %v1804 = vsel %vm1803, %v1795, %v1800
          %v1805 = vrsqrt.pop %v1708
          %v1806 = vmul.f32 %v1805, %v1708
          %v1807 = vmul.f32 %v1806, %v1805
          %v1808 = vmul.f32 0.5, %v1807
          %v1809 = vsub.f32 1.5, %v1808
          %v1810 = vmul.f32 %v1805, %v1809
          %vm1811 = vweird.f32 %v1708
          %vm1812 = vweird.f32 %v1805
          %vm1813 = vmor %vm1811, %vm1812
          %v1814 = vsel %vm1813, %v1805, %v1810
          %v1815 = vrsqrt.pop %v1709
          %v1816 = vmul.f32 %v1815, %v1709
          %v1817 = vmul.f32 %v1816, %v1815
          %v1818 = vmul.f32 0.5, %v1817
          %v1819 = vsub.f32 1.5, %v1818
          %v1820 = vmul.f32 %v1815, %v1819
          %vm1821 = vweird.f32 %v1709
          %vm1822 = vweird.f32 %v1815
          %vm1823 = vmor %vm1821, %vm1822
          %v1824 = vsel %vm1823, %v1815, %v1820
          %v1825 = vrsqrt.pop %v1710
          %v1826 = vmul.f32 %v1825, %v1710
          %v1827 = vmul.f32 %v1826, %v1825
          %v1828 = vmul.f32 0.5, %v1827
          %v1829 = vsub.f32 1.5, %v1828
          %v1830 = vmul.f32 %v1825, %v1829
          %vm1831 = vweird.f32 %v1710
          %vm1832 = vweird.f32 %v1825
          %vm1833 = vmor %vm1831, %vm1832
          %v1834 = vsel %vm1833, %v1825, %v1830
          %v1835 = vrsqrt.pop %v1711
          %v1836 = vmul.f32 %v1835, %v1711
          %v1837 = vmul.f32 %v1836, %v1835
          %v1838 = vmul.f32 0.5, %v1837
          %v1839 = vsub.f32 1.5, %v1838
          %v1840 = vmul.f32 %v1835, %v1839
          %vm1841 = vweird.f32 %v1711
          %vm1842 = vweird.f32 %v1835
          %vm1843 = vmor %vm1841, %vm1842
          %v1844 = vsel %vm1843, %v1835, %v1840
          %v1845 = vrsqrt.pop %v1712
          %v1846 = vmul.f32 %v1845, %v1712
          %v1847 = vmul.f32 %v1846, %v1845
          %v1848 = vmul.f32 0.5, %v1847
          %v1849 = vsub.f32 1.5, %v1848
          %v1850 = vmul.f32 %v1845, %v1849
          %vm1851 = vweird.f32 %v1712
          %vm1852 = vweird.f32 %v1845
          %vm1853 = vmor %vm1851, %vm1852
          %v1854 = vsel %vm1853, %v1845, %v1850
          %v1855 = vrsqrt.pop %v1713
          %v1856 = vmul.f32 %v1855, %v1713
          %v1857 = vmul.f32 %v1856, %v1855
          %v1858 = vmul.f32 0.5, %v1857
          %v1859 = vsub.f32 1.5, %v1858
          %v1860 = vmul.f32 %v1855, %v1859
          %vm1861 = vweird.f32 %v1713
          %vm1862 = vweird.f32 %v1855
          %vm1863 = vmor %vm1861, %vm1862
          %v1864 = vsel %vm1863, %v1855, %v1860
          %v1865 = vrsqrt.pop %v1714
          %v1866 = vmul.f32 %v1865, %v1714
          %v1867 = vmul.f32 %v1866, %v1865
          %v1868 = vmul.f32 0.5, %v1867
          %v1869 = vsub.f32 1.5, %v1868
          %v1870 = vmul.f32 %v1865, %v1869
          %vm1871 = vweird.f32 %v1714
          %vm1872 = vweird.f32 %v1865
          %vm1873 = vmor %vm1871, %vm1872
          %v1874 = vsel %vm1873, %v1865, %v1870
          %v1875 = vmul.f32 %v1603, %v1724
          %v1876 = vmul.f32 %v1604, %v1734
          %v1877 = vmul.f32 %v1605, %v1744
          %v1878 = vmul.f32 %v1606, %v1754
          %v1879 = vmul.f32 %v1607, %v1764
          %v1880 = vmul.f32 %v1608, %v1774
          %v1881 = vmul.f32 %v1609, %v1784
          %v1882 = vmul.f32 %v1610, %v1794
          %v1883 = vmul.f32 %v1611, %v1804
          %v1884 = vmul.f32 %v1612, %v1814
          %v1885 = vmul.f32 %v1613, %v1824
          %v1886 = vmul.f32 %v1614, %v1834
          %v1887 = vmul.f32 %v1615, %v1844
          %v1888 = vmul.f32 %v1616, %v1854
          %v1889 = vmul.f32 %v1617, %v1864
          %v1890 = vmul.f32 %v1618, %v1874
          %v1891 = vld [vmem:[%s7] sm:$0xf]
          %v1892 = vld [vmem:[%s7 + $0x4] sm:$0xf]
          %v1893 = vld [vmem:[%s7 + $0x8] sm:$0xf]
          %v1894 = vld [vmem:[%s7 + $0xc] sm:$0xf]
          %v1895 = vld [vmem:[%s7 + $0x10] sm:$0xf]
          %v1896 = vld [vmem:[%s7 + $0x14] sm:$0xf]
          %v1897 = vld [vmem:[%s7 + $0x18] sm:$0xf]
          %v1898 = vld [vmem:[%s7 + $0x1c] sm:$0xf]
          %v1899 = vpack.c.bf16 %v1876, %v1875
          %v1900 = vpack.c.bf16 %v1878, %v1877
          %v1901 = vpack.c.bf16 %v1880, %v1879
          %v1902 = vpack.c.bf16 %v1882, %v1881
          %v1903 = vpack.c.bf16 %v1884, %v1883
          %v1904 = vpack.c.bf16 %v1886, %v1885
          %v1905 = vpack.c.bf16 %v1888, %v1887
          %v1906 = vpack.c.bf16 %v1890, %v1889
          %v1915 = vunpack.c.l.b16 %v1891
          %v1916 = vunpack.c.l.b16 %v1892
          %v1917 = vunpack.c.l.b16 %v1893
          %v1918 = vunpack.c.l.b16 %v1894
          %v1919 = vunpack.c.l.b16 %v1895
          %v1920 = vunpack.c.l.b16 %v1896
          %v1921 = vunpack.c.l.b16 %v1897
          %v1922 = vunpack.c.l.b16 %v1898
          %v1923 = vpack.c.b16 %v1916, %v1915
          %v1924 = vpack.c.b16 %v1918, %v1917
          %v1925 = vpack.c.b16 %v1920, %v1919
          %v1926 = vpack.c.b16 %v1922, %v1921
          %1931 = vmatpush.bf16.msra.mxu0 %v1906
          %1932 = vmatpush.bf16.msra.mxu0 %v1905
          %1933 = vmatpush.bf16.msra.mxu0 %v1904
          %1934 = vmatpush.bf16.msra.mxu0 %v1903
          %1935 = vmatpush.bf16.msra.mxu0 %v1902
          %1936 = vmatpush.bf16.msra.mxu0 %v1901
          %1937 = vmatpush.bf16.msra.mxu0 %v1900
          %1938 = vmatpush.bf16.msra.mxu0 %v1899
          %1939 = vmatmul.bf16.gmra.mxu0 %v1923
          %v1940 = vpop.f32.mrf.mxu0
          %v1941 = vadd.f32 0.0, %v1940
          %v1942 = vpop.f32.mrf.mxu0
          %v1943 = vadd.f32 0.0, %v1942
          %1944 = vmatmul.bf16.gmra.mxu0 %v1924
          %v1945 = vpop.f32.mrf.mxu0
          %v1946 = vadd.f32 0.0, %v1945
          %v1947 = vpop.f32.mrf.mxu0
          %v1948 = vadd.f32 0.0, %v1947
          %1949 = vmatmul.bf16.gmra.mxu0 %v1925
          %v1950 = vpop.f32.mrf.mxu0
          %v1951 = vadd.f32 0.0, %v1950
          %v1952 = vpop.f32.mrf.mxu0
          %v1953 = vadd.f32 0.0, %v1952
          %1954 = vmatmul.bf16.gmra.mxu0 %v1926
          %v1955 = vpop.f32.mrf.mxu0
          %v1956 = vadd.f32 0.0, %v1955
          %v1957 = vpop.f32.mrf.mxu0
          %v1958 = vadd.f32 0.0, %v1957
          %1959 = vdwg.mxu0
          %v1960 = vsel %vm398, %v1941, 0.0
          %1961 = vadd.xlane.f32.xlu0 %v1960
          %v1962 = vpop.xlane.xlu0 %1961
          %v1963 = vsel %vm398, %v1943, 0.0
          %1964 = vadd.xlane.f32.xlu0 %v1963
          %v1965 = vpop.xlane.xlu0 %1964
          %v1966 = vsel %vm398, %v1946, 0.0
          %1967 = vadd.xlane.f32.xlu0 %v1966
          %v1968 = vpop.xlane.xlu0 %1967
          %v1969 = vsel %vm398, %v1948, 0.0
          %1970 = vadd.xlane.f32.xlu0 %v1969
          %v1971 = vpop.xlane.xlu0 %1970
          %v1972 = vsel %vm398, %v1951, 0.0
          %1973 = vadd.xlane.f32.xlu0 %v1972
          %v1974 = vpop.xlane.xlu0 %1973
          %v1975 = vsel %vm398, %v1953, 0.0
          %1976 = vadd.xlane.f32.xlu0 %v1975
          %v1977 = vpop.xlane.xlu0 %1976
          %v1978 = vsel %vm398, %v1956, 0.0
          %1979 = vadd.xlane.f32.xlu0 %v1978
          %v1980 = vpop.xlane.xlu0 %1979
          %v1981 = vsel %vm398, %v1958, 0.0
          %1982 = vadd.xlane.f32.xlu0 %v1981
          %v1983 = vpop.xlane.xlu0 %1982
          %v1984 = vmul.f32 %v1962, %v820
          %v1985 = vmul.f32 %v1965, %v820
          %v1986 = vmul.f32 %v1968, %v820
          %v1987 = vmul.f32 %v1971, %v820
          %v1988 = vmul.f32 %v1974, %v820
          %v1989 = vmul.f32 %v1977, %v820
          %v1990 = vmul.f32 %v1980, %v820
          %v1991 = vmul.f32 %v1983, %v820
          %v1992 = vsub.f32 %v1941, %v1984
          %v1993 = vsub.f32 %v1943, %v1985
          %v1994 = vsub.f32 %v1946, %v1986
          %v1995 = vsub.f32 %v1948, %v1987
          %v1996 = vsub.f32 %v1951, %v1988
          %v1997 = vsub.f32 %v1953, %v1989
          %v1998 = vsub.f32 %v1956, %v1990
          %v1999 = vsub.f32 %v1958, %v1991
          %v2000 = vmul.f32 %v1992, %v1992
          %v2001 = vmul.f32 %v1993, %v1993
          %v2002 = vmul.f32 %v1994, %v1994
          %v2003 = vmul.f32 %v1995, %v1995
          %v2004 = vmul.f32 %v1996, %v1996
          %v2005 = vmul.f32 %v1997, %v1997
          %v2006 = vmul.f32 %v1998, %v1998
          %v2007 = vmul.f32 %v1999, %v1999
          %v2008 = vsel %vm398, %v2000, 0.0
          %2009 = vadd.xlane.f32.xlu0 %v2008
          %v2010 = vpop.xlane.xlu0 %2009
          %v2011 = vsel %vm398, %v2001, 0.0
          %2012 = vadd.xlane.f32.xlu0 %v2011
          %v2013 = vpop.xlane.xlu0 %2012
          %v2014 = vsel %vm398, %v2002, 0.0
          %2015 = vadd.xlane.f32.xlu0 %v2014
          %v2016 = vpop.xlane.xlu0 %2015
          %v2017 = vsel %vm398, %v2003, 0.0
          %2018 = vadd.xlane.f32.xlu0 %v2017
          %v2019 = vpop.xlane.xlu0 %2018
          %v2020 = vsel %vm398, %v2004, 0.0
          %2021 = vadd.xlane.f32.xlu0 %v2020
          %v2022 = vpop.xlane.xlu0 %2021
          %v2023 = vsel %vm398, %v2005, 0.0
          %2024 = vadd.xlane.f32.xlu0 %v2023
          %v2025 = vpop.xlane.xlu0 %2024
          %v2026 = vsel %vm398, %v2006, 0.0
          %2027 = vadd.xlane.f32.xlu0 %v2026
          %v2028 = vpop.xlane.xlu0 %2027
          %v2029 = vsel %vm398, %v2007, 0.0
          %2030 = vadd.xlane.f32.xlu0 %v2029
          %v2031 = vpop.xlane.xlu0 %2030
          %v2032 = vmul.f32 %v2010, %v820
          %v2033 = vmul.f32 %v2013, %v820
          %v2034 = vmul.f32 %v2016, %v820
          %v2035 = vmul.f32 %v2019, %v820
          %v2036 = vmul.f32 %v2022, %v820
          %v2037 = vmul.f32 %v2025, %v820
          %v2038 = vmul.f32 %v2028, %v820
          %v2039 = vmul.f32 %v2031, %v820
          %v2040 = vadd.f32 %v2032, 1e-05
          %v2041 = vadd.f32 %v2033, 1e-05
          %v2042 = vadd.f32 %v2034, 1e-05
          %v2043 = vadd.f32 %v2035, 1e-05
          %v2044 = vadd.f32 %v2036, 1e-05
          %v2045 = vadd.f32 %v2037, 1e-05
          %v2046 = vadd.f32 %v2038, 1e-05
          %v2047 = vadd.f32 %v2039, 1e-05
          %v2048 = vrsqrt.pop %v2040
          %v2049 = vmul.f32 %v2048, %v2040
          %v2050 = vmul.f32 %v2049, %v2048
          %v2051 = vmul.f32 0.5, %v2050
          %v2052 = vsub.f32 1.5, %v2051
          %v2053 = vmul.f32 %v2048, %v2052
          %vm2054 = vweird.f32 %v2040
          %vm2055 = vweird.f32 %v2048
          %vm2056 = vmor %vm2054, %vm2055
          %v2057 = vsel %vm2056, %v2048, %v2053
          %v2058 = vrsqrt.pop %v2041
          %v2059 = vmul.f32 %v2058, %v2041
          %v2060 = vmul.f32 %v2059, %v2058
          %v2061 = vmul.f32 0.5, %v2060
          %v2062 = vsub.f32 1.5, %v2061
          %v2063 = vmul.f32 %v2058, %v2062
          %vm2064 = vweird.f32 %v2041
          %vm2065 = vweird.f32 %v2058
          %vm2066 = vmor %vm2064, %vm2065
          %v2067 = vsel %vm2066, %v2058, %v2063
          %v2068 = vrsqrt.pop %v2042
          %v2069 = vmul.f32 %v2068, %v2042
          %v2070 = vmul.f32 %v2069, %v2068
          %v2071 = vmul.f32 0.5, %v2070
          %v2072 = vsub.f32 1.5, %v2071
          %v2073 = vmul.f32 %v2068, %v2072
          %vm2074 = vweird.f32 %v2042
          %vm2075 = vweird.f32 %v2068
          %vm2076 = vmor %vm2074, %vm2075
          %v2077 = vsel %vm2076, %v2068, %v2073
          %v2078 = vrsqrt.pop %v2043
          %v2079 = vmul.f32 %v2078, %v2043
          %v2080 = vmul.f32 %v2079, %v2078
          %v2081 = vmul.f32 0.5, %v2080
          %v2082 = vsub.f32 1.5, %v2081
          %v2083 = vmul.f32 %v2078, %v2082
          %vm2084 = vweird.f32 %v2043
          %vm2085 = vweird.f32 %v2078
          %vm2086 = vmor %vm2084, %vm2085
          %v2087 = vsel %vm2086, %v2078, %v2083
          %v2088 = vrsqrt.pop %v2044
          %v2089 = vmul.f32 %v2088, %v2044
          %v2090 = vmul.f32 %v2089, %v2088
          %v2091 = vmul.f32 0.5, %v2090
          %v2092 = vsub.f32 1.5, %v2091
          %v2093 = vmul.f32 %v2088, %v2092
          %vm2094 = vweird.f32 %v2044
          %vm2095 = vweird.f32 %v2088
          %vm2096 = vmor %vm2094, %vm2095
          %v2097 = vsel %vm2096, %v2088, %v2093
          %v2098 = vrsqrt.pop %v2045
          %v2099 = vmul.f32 %v2098, %v2045
          %v2100 = vmul.f32 %v2099, %v2098
          %v2101 = vmul.f32 0.5, %v2100
          %v2102 = vsub.f32 1.5, %v2101
          %v2103 = vmul.f32 %v2098, %v2102
          %vm2104 = vweird.f32 %v2045
          %vm2105 = vweird.f32 %v2098
          %vm2106 = vmor %vm2104, %vm2105
          %v2107 = vsel %vm2106, %v2098, %v2103
          %v2108 = vrsqrt.pop %v2046
          %v2109 = vmul.f32 %v2108, %v2046
          %v2110 = vmul.f32 %v2109, %v2108
          %v2111 = vmul.f32 0.5, %v2110
          %v2112 = vsub.f32 1.5, %v2111
          %v2113 = vmul.f32 %v2108, %v2112
          %vm2114 = vweird.f32 %v2046
          %vm2115 = vweird.f32 %v2108
          %vm2116 = vmor %vm2114, %vm2115
          %v2117 = vsel %vm2116, %v2108, %v2113
          %v2118 = vrsqrt.pop %v2047
          %v2119 = vmul.f32 %v2118, %v2047
          %v2120 = vmul.f32 %v2119, %v2118
          %v2121 = vmul.f32 0.5, %v2120
          %v2122 = vsub.f32 1.5, %v2121
          %v2123 = vmul.f32 %v2118, %v2122
          %vm2124 = vweird.f32 %v2047
          %vm2125 = vweird.f32 %v2118
          %vm2126 = vmor %vm2124, %vm2125
          %v2127 = vsel %vm2126, %v2118, %v2123
          %v2128 = vmul.f32 %v1992, %v2057
          %v2129 = vmul.f32 %v1993, %v2067
          %v2130 = vmul.f32 %v1994, %v2077
          %v2131 = vmul.f32 %v1995, %v2087
          %v2132 = vmul.f32 %v1996, %v2097
          %v2133 = vmul.f32 %v1997, %v2107
          %v2134 = vmul.f32 %v1998, %v2117
          %v2135 = vmul.f32 %v1999, %v2127
          %2136 = vset.pattern.permute.xlu0 4
          %2137 = vperm.xlu0 %2136, %v692
          %v2138 = vpop.permute.xlu0 %2137
          %2140 = vset.pattern.permute.xlu0 4
          %2141 = vperm.xlu0 %2140, %v693
          %v2142 = vpop.permute.xlu0 %2141
          %2144 = vset.pattern.permute.xlu0 4
          %2145 = vperm.xlu0 %2144, %v694
          %v2146 = vpop.permute.xlu0 %2145
          %2148 = vset.pattern.permute.xlu0 4
          %2149 = vperm.xlu0 %2148, %v695
          %v2150 = vpop.permute.xlu0 %2149
          %2152 = vset.pattern.permute.xlu0 4
          %2153 = vperm.xlu0 %2152, %v696
          %v2154 = vpop.permute.xlu0 %2153
          %2156 = vset.pattern.permute.xlu0 4
          %2157 = vperm.xlu0 %2156, %v697
          %v2158 = vpop.permute.xlu0 %2157
          %2160 = vset.pattern.permute.xlu0 4
          %2161 = vperm.xlu0 %2160, %v698
          %v2162 = vpop.permute.xlu0 %2161
          %2164 = vset.pattern.permute.xlu0 4
          %2165 = vperm.xlu0 %2164, %v699
          %v2166 = vpop.permute.xlu0 %2165
          %v2168 = vmul.f32 %v2128, %v2138
          %v2169 = vmul.f32 %v2129, %v2142
          %v2170 = vmul.f32 %v2130, %v2146
          %v2171 = vmul.f32 %v2131, %v2150
          %v2172 = vmul.f32 %v2132, %v2154
          %v2173 = vmul.f32 %v2133, %v2158
          %v2174 = vmul.f32 %v2134, %v2162
          %v2175 = vmul.f32 %v2135, %v2166
          %2176 = vset.pattern.permute.xlu0 5
          %2177 = vperm.xlu0 %2176, %v692
          %v2178 = vpop.permute.xlu0 %2177
          %2180 = vset.pattern.permute.xlu0 5
          %2181 = vperm.xlu0 %2180, %v693
          %v2182 = vpop.permute.xlu0 %2181
          %2184 = vset.pattern.permute.xlu0 5
          %2185 = vperm.xlu0 %2184, %v694
          %v2186 = vpop.permute.xlu0 %2185
          %2188 = vset.pattern.permute.xlu0 5
          %2189 = vperm.xlu0 %2188, %v695
          %v2190 = vpop.permute.xlu0 %2189
          %2192 = vset.pattern.permute.xlu0 5
          %2193 = vperm.xlu0 %2192, %v696
          %v2194 = vpop.permute.xlu0 %2193
          %2196 = vset.pattern.permute.xlu0 5
          %2197 = vperm.xlu0 %2196, %v697
          %v2198 = vpop.permute.xlu0 %2197
          %2200 = vset.pattern.permute.xlu0 5
          %2201 = vperm.xlu0 %2200, %v698
          %v2202 = vpop.permute.xlu0 %2201
          %2204 = vset.pattern.permute.xlu0 5
          %2205 = vperm.xlu0 %2204, %v699
          %v2206 = vpop.permute.xlu0 %2205
          %v2208 = vadd.f32 %v2168, %v2178
          %v2209 = vadd.f32 %v2169, %v2182
          %v2210 = vadd.f32 %v2170, %v2186
          %v2211 = vadd.f32 %v2171, %v2190
          %v2212 = vadd.f32 %v2172, %v2194
          %v2213 = vadd.f32 %v2173, %v2198
          %v2214 = vadd.f32 %v2174, %v2202
          %v2215 = vadd.f32 %v2175, %v2206
          %v2216 = vmax.f32 %v2208, 0.0
          %v2217 = vmax.f32 %v2209, 0.0
          %v2218 = vmax.f32 %v2210, 0.0
          %v2219 = vmax.f32 %v2211, 0.0
          %v2220 = vmax.f32 %v2212, 0.0
          %v2221 = vmax.f32 %v2213, 0.0
          %v2222 = vmax.f32 %v2214, 0.0
          %v2223 = vmax.f32 %v2215, 0.0
          %v2224 = vld [vmem:[%s8] sm:$0xf]
          %v2225 = vld [vmem:[%s8 + $0x4] sm:$0xf]
          %v2226 = vld [vmem:[%s8 + $0x8] sm:$0xf]
          %v2227 = vld [vmem:[%s8 + $0xc] sm:$0xf]
          %v2228 = vld [vmem:[%s8 + $0x10] sm:$0xf]
          %v2229 = vld [vmem:[%s8 + $0x14] sm:$0xf]
          %v2230 = vld [vmem:[%s8 + $0x18] sm:$0xf]
          %v2231 = vld [vmem:[%s8 + $0x1c] sm:$0xf]
          %v2232 = vld [vmem:[%s8 + $0x20] sm:$0xf]
          %v2233 = vld [vmem:[%s8 + $0x24] sm:$0xf]
          %v2234 = vld [vmem:[%s8 + $0x28] sm:$0xf]
          %v2235 = vld [vmem:[%s8 + $0x2c] sm:$0xf]
          %v2236 = vld [vmem:[%s8 + $0x30] sm:$0xf]
          %v2237 = vld [vmem:[%s8 + $0x34] sm:$0xf]
          %v2238 = vld [vmem:[%s8 + $0x38] sm:$0xf]
          %v2239 = vld [vmem:[%s8 + $0x3c] sm:$0xf]
          %v2240 = vpack.c.bf16 %v2217, %v2216
          %v2241 = vpack.c.bf16 %v2219, %v2218
          %v2242 = vpack.c.bf16 %v2221, %v2220
          %v2243 = vpack.c.bf16 %v2223, %v2222
          %2244 = vset.pattern.permute.xlu0 6
          %2245 = vperm.xlu0 %2244, %v692
          %v2246 = vpop.permute.xlu0 %2245
          %2248 = vset.pattern.permute.xlu0 6
          %2249 = vperm.xlu0 %2248, %v693
          %v2250 = vpop.permute.xlu0 %2249
          %2252 = vset.pattern.permute.xlu0 6
          %2253 = vperm.xlu0 %2252, %v694
          %v2254 = vpop.permute.xlu0 %2253
          %2256 = vset.pattern.permute.xlu0 6
          %2257 = vperm.xlu0 %2256, %v695
          %v2258 = vpop.permute.xlu0 %2257
          %2260 = vset.pattern.permute.xlu0 6
          %2261 = vperm.xlu0 %2260, %v696
          %v2262 = vpop.permute.xlu0 %2261
          %2264 = vset.pattern.permute.xlu0 6
          %2265 = vperm.xlu0 %2264, %v697
          %v2266 = vpop.permute.xlu0 %2265
          %2268 = vset.pattern.permute.xlu0 6
          %2269 = vperm.xlu0 %2268, %v698
          %v2270 = vpop.permute.xlu0 %2269
          %2272 = vset.pattern.permute.xlu0 6
          %2273 = vperm.xlu0 %2272, %v699
          %v2274 = vpop.permute.xlu0 %2273
          %2277 = vset.pattern.permute.xlu0 6
          %2278 = vperm.xlu0 %2277, %v700
          %v2279 = vpop.permute.xlu0 %2278
          %2282 = vset.pattern.permute.xlu0 6
          %2283 = vperm.xlu0 %2282, %v701
          %v2284 = vpop.permute.xlu0 %2283
          %2287 = vset.pattern.permute.xlu0 6
          %2288 = vperm.xlu0 %2287, %v702
          %v2289 = vpop.permute.xlu0 %2288
          %2292 = vset.pattern.permute.xlu0 6
          %2293 = vperm.xlu0 %2292, %v703
          %v2294 = vpop.permute.xlu0 %2293
          %2297 = vset.pattern.permute.xlu0 6
          %2298 = vperm.xlu0 %2297, %v704
          %v2299 = vpop.permute.xlu0 %2298
          %2302 = vset.pattern.permute.xlu0 6
          %2303 = vperm.xlu0 %2302, %v705
          %v2304 = vpop.permute.xlu0 %2303
          %2307 = vset.pattern.permute.xlu0 6
          %2308 = vperm.xlu0 %2307, %v706
          %v2309 = vpop.permute.xlu0 %2308
          %2312 = vset.pattern.permute.xlu0 6
          %2313 = vperm.xlu0 %2312, %v707
          %v2314 = vpop.permute.xlu0 %2313
          %v2332 = vunpack.c.l.b16 %v2224
          %v2333 = vunpack.c.l.b16 %v2225
          %v2334 = vunpack.c.l.b16 %v2226
          %v2335 = vunpack.c.l.b16 %v2227
          %v2336 = vunpack.c.l.b16 %v2228
          %v2337 = vunpack.c.l.b16 %v2229
          %v2338 = vunpack.c.l.b16 %v2230
          %v2339 = vunpack.c.l.b16 %v2231
          %v2340 = vunpack.c.l.b16 %v2232
          %v2341 = vunpack.c.l.b16 %v2233
          %v2342 = vunpack.c.l.b16 %v2234
          %v2343 = vunpack.c.l.b16 %v2235
          %v2344 = vunpack.c.l.b16 %v2236
          %v2345 = vunpack.c.l.b16 %v2237
          %v2346 = vunpack.c.l.b16 %v2238
          %v2347 = vunpack.c.l.b16 %v2239
          %v2348 = vpack.c.b16 %v2333, %v2332
          %v2349 = vpack.c.b16 %v2335, %v2334
          %v2350 = vpack.c.b16 %v2337, %v2336
          %v2351 = vpack.c.b16 %v2339, %v2338
          %v2352 = vpack.c.b16 %v2341, %v2340
          %v2353 = vpack.c.b16 %v2343, %v2342
          %v2354 = vpack.c.b16 %v2345, %v2344
          %v2355 = vpack.c.b16 %v2347, %v2346
          %v2357 = vsel %vm748, %v2348, 0
          %v2360 = vsel %vm748, %v2349, 0
          %v2363 = vsel %vm748, %v2350, 0
          %v2366 = vsel %vm748, %v2351, 0
          %v2369 = vsel %vm748, %v2352, 0
          %v2372 = vsel %vm748, %v2353, 0
          %v2375 = vsel %vm748, %v2354, 0
          %v2378 = vsel %vm748, %v2355, 0
          %2380 = vmatpush.bf16.msra.mxu0 0
          %2381 = vmatpush.bf16.msra.mxu0 0
          %2382 = vmatpush.bf16.msra.mxu0 0
          %2383 = vmatpush.bf16.msra.mxu0 0
          %2384 = vmatpush.bf16.msra.mxu0 %v2243
          %2385 = vmatpush.bf16.msra.mxu0 %v2242
          %2386 = vmatpush.bf16.msra.mxu0 %v2241
          %2387 = vmatpush.bf16.msra.mxu0 %v2240
          %2388 = vmatmul.bf16.gmra.mxu0 %v2357
          %v2389 = vpop.f32.mrf.mxu0
          %v2390 = vadd.f32 %v2246, %v2389
          %v2391 = vpop.f32.mrf.mxu0
          %v2392 = vadd.f32 %v2250, %v2391
          %2393 = vmatmul.bf16.gmra.mxu0 %v2360
          %v2394 = vpop.f32.mrf.mxu0
          %v2395 = vadd.f32 %v2254, %v2394
          %v2396 = vpop.f32.mrf.mxu0
          %v2397 = vadd.f32 %v2258, %v2396
          %2398 = vmatmul.bf16.gmra.mxu0 %v2363
          %v2399 = vpop.f32.mrf.mxu0
          %v2400 = vadd.f32 %v2262, %v2399
          %v2401 = vpop.f32.mrf.mxu0
          %v2402 = vadd.f32 %v2266, %v2401
          %2403 = vmatmul.bf16.gmra.mxu0 %v2366
          %v2404 = vpop.f32.mrf.mxu0
          %v2405 = vadd.f32 %v2270, %v2404
          %v2406 = vpop.f32.mrf.mxu0
          %v2407 = vadd.f32 %v2274, %v2406
          %2408 = vmatmul.bf16.gmra.mxu0 %v2369
          %v2409 = vpop.f32.mrf.mxu0
          %v2410 = vadd.f32 %v2279, %v2409
          %v2411 = vpop.f32.mrf.mxu0
          %v2412 = vadd.f32 %v2284, %v2411
          %2413 = vmatmul.bf16.gmra.mxu0 %v2372
          %v2414 = vpop.f32.mrf.mxu0
          %v2415 = vadd.f32 %v2289, %v2414
          %v2416 = vpop.f32.mrf.mxu0
          %v2417 = vadd.f32 %v2294, %v2416
          %2418 = vmatmul.bf16.gmra.mxu0 %v2375
          %v2419 = vpop.f32.mrf.mxu0
          %v2420 = vadd.f32 %v2299, %v2419
          %v2421 = vpop.f32.mrf.mxu0
          %v2422 = vadd.f32 %v2304, %v2421
          %2423 = vmatmul.bf16.gmra.mxu0 %v2378
          %v2424 = vpop.f32.mrf.mxu0
          %v2425 = vadd.f32 %v2309, %v2424
          %v2426 = vpop.f32.mrf.mxu0
          %v2427 = vadd.f32 %v2314, %v2426
          %2428 = vdwg.mxu0
          %v2429 = vmul.f32 %v2390, %v1883
          %v2430 = vmul.f32 %v2392, %v1884
          %v2431 = vmul.f32 %v2395, %v1885
          %v2432 = vmul.f32 %v2397, %v1886
          %v2433 = vmul.f32 %v2400, %v1887
          %v2434 = vmul.f32 %v2402, %v1888
          %v2435 = vmul.f32 %v2405, %v1889
          %v2436 = vmul.f32 %v2407, %v1890
          %v2437 = vsel %vm398, %v2429, 0.0
          %v2438 = vsel %vm398, %v2430, 0.0
          %v2439 = vadd.f32 %v2437, %v2438
          %v2440 = vsel %vm398, %v2431, 0.0
          %v2441 = vadd.f32 %v2439, %v2440
          %v2442 = vsel %vm398, %v2432, 0.0
          %v2443 = vadd.f32 %v2441, %v2442
          %v2444 = vsel %vm398, %v2433, 0.0
          %v2445 = vadd.f32 %v2443, %v2444
          %v2446 = vsel %vm398, %v2434, 0.0
          %v2447 = vadd.f32 %v2445, %v2446
          %v2448 = vsel %vm398, %v2435, 0.0
          %v2449 = vadd.f32 %v2447, %v2448
          %v2450 = vsel %vm398, %v2436, 0.0
          %v2451 = vadd.f32 %v2449, %v2450
          %v2452 = vrot.slane %v2451, 4
          %v2453 = vadd.f32 %v2451, %v2452
          %v2454 = vrot.slane %v2453, 2
          %v2455 = vadd.f32 %v2453, %v2454
          %v2456 = vrot.slane %v2455, 1
          %v2457 = vadd.f32 %v2455, %v2456
          %v2458 = vmul.f32 %v2390, %v2390
          %v2459 = vmul.f32 %v2392, %v2392
          %v2460 = vmul.f32 %v2395, %v2395
          %v2461 = vmul.f32 %v2397, %v2397
          %v2462 = vmul.f32 %v2400, %v2400
          %v2463 = vmul.f32 %v2402, %v2402
          %v2464 = vmul.f32 %v2405, %v2405
          %v2465 = vmul.f32 %v2407, %v2407
          %v2466 = vsel %vm398, %v2458, 0.0
          %v2467 = vsel %vm398, %v2459, 0.0
          %v2468 = vadd.f32 %v2466, %v2467
          %v2469 = vsel %vm398, %v2460, 0.0
          %v2470 = vadd.f32 %v2468, %v2469
          %v2471 = vsel %vm398, %v2461, 0.0
          %v2472 = vadd.f32 %v2470, %v2471
          %v2473 = vsel %vm398, %v2462, 0.0
          %v2474 = vadd.f32 %v2472, %v2473
          %v2475 = vsel %vm398, %v2463, 0.0
          %v2476 = vadd.f32 %v2474, %v2475
          %v2477 = vsel %vm398, %v2464, 0.0
          %v2478 = vadd.f32 %v2476, %v2477
          %v2479 = vsel %vm398, %v2465, 0.0
          %v2480 = vadd.f32 %v2478, %v2479
          %v2481 = vrot.slane %v2480, 4
          %v2482 = vadd.f32 %v2480, %v2481
          %v2483 = vrot.slane %v2482, 2
          %v2484 = vadd.f32 %v2482, %v2483
          %v2485 = vrot.slane %v2484, 1
          %v2486 = vadd.f32 %v2484, %v2485
          %v2487 = vmul.f32 %v1883, %v1883
          %v2488 = vmul.f32 %v1884, %v1884
          %v2489 = vmul.f32 %v1885, %v1885
          %v2490 = vmul.f32 %v1886, %v1886
          %v2491 = vmul.f32 %v1887, %v1887
          %v2492 = vmul.f32 %v1888, %v1888
          %v2493 = vmul.f32 %v1889, %v1889
          %v2494 = vmul.f32 %v1890, %v1890
          %v2495 = vsel %vm398, %v2487, 0.0
          %v2496 = vsel %vm398, %v2488, 0.0
          %v2497 = vadd.f32 %v2495, %v2496
          %v2498 = vsel %vm398, %v2489, 0.0
          %v2499 = vadd.f32 %v2497, %v2498
          %v2500 = vsel %vm398, %v2490, 0.0
          %v2501 = vadd.f32 %v2499, %v2500
          %v2502 = vsel %vm398, %v2491, 0.0
          %v2503 = vadd.f32 %v2501, %v2502
          %v2504 = vsel %vm398, %v2492, 0.0
          %v2505 = vadd.f32 %v2503, %v2504
          %v2506 = vsel %vm398, %v2493, 0.0
          %v2507 = vadd.f32 %v2505, %v2506
          %v2508 = vsel %vm398, %v2494, 0.0
          %v2509 = vadd.f32 %v2507, %v2508
          %v2510 = vrot.slane %v2509, 4
          %v2511 = vadd.f32 %v2509, %v2510
          %v2512 = vrot.slane %v2511, 2
          %v2513 = vadd.f32 %v2511, %v2512
          %v2514 = vrot.slane %v2513, 1
          %v2515 = vadd.f32 %v2513, %v2514
          %v2516 = vmul.f32 %v2486, %v2515
          %v2517 = vmax.f32 %v2516, 1e-16
          %v2518 = vrsqrt.pop %v2517
          %v2519 = vmul.f32 %v2518, %v2517
          %v2520 = vmul.f32 %v2519, %v2518
          %v2521 = vmul.f32 0.5, %v2520
          %v2522 = vsub.f32 1.5, %v2521
          %v2523 = vmul.f32 %v2518, %v2522
          %vm2524 = vweird.f32 %v2517
          %vm2525 = vweird.f32 %v2518
          %vm2526 = vmor %vm2524, %vm2525
          %v2527 = vsel %vm2526, %v2518, %v2523
          %v2528 = vmul.f32 %v2457, %v2527
          %vm2529 = vcmask 24576
          %v2530 = vsel %vm2529, %v2528, 0.0
          %2531 = vadd.xlane.f32.xlu0 %v2530
          %v2532 = vpop.xlane.xlu0 %2531
          %v2533 = vrot.slane %v2532, 4
          %v2534 = vadd.f32 %v2532, %v2533
          %v2535 = vrot.slane %v2534, 2
          %v2536 = vadd.f32 %v2534, %v2535
          %v2537 = vrot.slane %v2536, 1
          %v2538 = vadd.f32 %v2536, %v2537
          %s2539 = vtos %v2538
          %v2540 = vrcp.pop 4.0
          %v2541 = vmul.f32 4.0, %v2540
          %v2542 = vsub.f32 1.0, %v2541
          %v2543 = vmul.f32 %v2540, %v2542
          %v2544 = vadd.f32 %v2540, %v2543
          %vm2545 = vweird.f32 %v2540
          %v2546 = vsel %vm2545, %v2540, %v2544
          %s2547 = vtos %v2546
          %s2548 = smul.f32 %s2539, %s2547
          %v2549 = vmul.f32 %v2410, %v1875
          %v2550 = vmul.f32 %v2412, %v1876
          %v2551 = vmul.f32 %v2415, %v1877
          %v2552 = vmul.f32 %v2417, %v1878
          %v2553 = vmul.f32 %v2420, %v1879
          %v2554 = vmul.f32 %v2422, %v1880
          %v2555 = vmul.f32 %v2425, %v1881
          %v2556 = vmul.f32 %v2427, %v1882
          %v2557 = vsel %vm398, %v2549, 0.0
          %v2558 = vsel %vm398, %v2550, 0.0
          %v2559 = vadd.f32 %v2557, %v2558
          %v2560 = vsel %vm398, %v2551, 0.0
          %v2561 = vadd.f32 %v2559, %v2560
          %v2562 = vsel %vm398, %v2552, 0.0
          %v2563 = vadd.f32 %v2561, %v2562
          %v2564 = vsel %vm398, %v2553, 0.0
          %v2565 = vadd.f32 %v2563, %v2564
          %v2566 = vsel %vm398, %v2554, 0.0
          %v2567 = vadd.f32 %v2565, %v2566
          %v2568 = vsel %vm398, %v2555, 0.0
          %v2569 = vadd.f32 %v2567, %v2568
          %v2570 = vsel %vm398, %v2556, 0.0
          %v2571 = vadd.f32 %v2569, %v2570
          %v2572 = vrot.slane %v2571, 4
          %v2573 = vadd.f32 %v2571, %v2572
          %v2574 = vrot.slane %v2573, 2
          %v2575 = vadd.f32 %v2573, %v2574
          %v2576 = vrot.slane %v2575, 1
          %v2577 = vadd.f32 %v2575, %v2576
          %v2578 = vmul.f32 %v2410, %v2410
          %v2579 = vmul.f32 %v2412, %v2412
          %v2580 = vmul.f32 %v2415, %v2415
          %v2581 = vmul.f32 %v2417, %v2417
          %v2582 = vmul.f32 %v2420, %v2420
          %v2583 = vmul.f32 %v2422, %v2422
          %v2584 = vmul.f32 %v2425, %v2425
          %v2585 = vmul.f32 %v2427, %v2427
          %v2586 = vsel %vm398, %v2578, 0.0
          %v2587 = vsel %vm398, %v2579, 0.0
          %v2588 = vadd.f32 %v2586, %v2587
          %v2589 = vsel %vm398, %v2580, 0.0
          %v2590 = vadd.f32 %v2588, %v2589
          %v2591 = vsel %vm398, %v2581, 0.0
          %v2592 = vadd.f32 %v2590, %v2591
          %v2593 = vsel %vm398, %v2582, 0.0
          %v2594 = vadd.f32 %v2592, %v2593
          %v2595 = vsel %vm398, %v2583, 0.0
          %v2596 = vadd.f32 %v2594, %v2595
          %v2597 = vsel %vm398, %v2584, 0.0
          %v2598 = vadd.f32 %v2596, %v2597
          %v2599 = vsel %vm398, %v2585, 0.0
          %v2600 = vadd.f32 %v2598, %v2599
          %v2601 = vrot.slane %v2600, 4
          %v2602 = vadd.f32 %v2600, %v2601
          %v2603 = vrot.slane %v2602, 2
          %v2604 = vadd.f32 %v2602, %v2603
          %v2605 = vrot.slane %v2604, 1
          %v2606 = vadd.f32 %v2604, %v2605
          %v2607 = vmul.f32 %v1875, %v1875
          %v2608 = vmul.f32 %v1876, %v1876
          %v2609 = vmul.f32 %v1877, %v1877
          %v2610 = vmul.f32 %v1878, %v1878
          %v2611 = vmul.f32 %v1879, %v1879
          %v2612 = vmul.f32 %v1880, %v1880
          %v2613 = vmul.f32 %v1881, %v1881
          %v2614 = vmul.f32 %v1882, %v1882
          %v2615 = vsel %vm398, %v2607, 0.0
          %v2616 = vsel %vm398, %v2608, 0.0
          %v2617 = vadd.f32 %v2615, %v2616
          %v2618 = vsel %vm398, %v2609, 0.0
          %v2619 = vadd.f32 %v2617, %v2618
          %v2620 = vsel %vm398, %v2610, 0.0
          %v2621 = vadd.f32 %v2619, %v2620
          %v2622 = vsel %vm398, %v2611, 0.0
          %v2623 = vadd.f32 %v2621, %v2622
          %v2624 = vsel %vm398, %v2612, 0.0
          %v2625 = vadd.f32 %v2623, %v2624
          %v2626 = vsel %vm398, %v2613, 0.0
          %v2627 = vadd.f32 %v2625, %v2626
          %v2628 = vsel %vm398, %v2614, 0.0
          %v2629 = vadd.f32 %v2627, %v2628
          %v2630 = vrot.slane %v2629, 4
          %v2631 = vadd.f32 %v2629, %v2630
          %v2632 = vrot.slane %v2631, 2
          %v2633 = vadd.f32 %v2631, %v2632
          %v2634 = vrot.slane %v2633, 1
          %v2635 = vadd.f32 %v2633, %v2634
          %v2636 = vmul.f32 %v2606, %v2635
          %v2637 = vmax.f32 %v2636, 1e-16
          %v2638 = vrsqrt.pop %v2637
          %v2639 = vmul.f32 %v2638, %v2637
          %v2640 = vmul.f32 %v2639, %v2638
          %v2641 = vmul.f32 0.5, %v2640
          %v2642 = vsub.f32 1.5, %v2641
          %v2643 = vmul.f32 %v2638, %v2642
          %vm2644 = vweird.f32 %v2637
          %vm2645 = vweird.f32 %v2638
          %vm2646 = vmor %vm2644, %vm2645
          %v2647 = vsel %vm2646, %v2638, %v2643
          %v2648 = vmul.f32 %v2577, %v2647
          %v2649 = vsel %vm2529, %v2648, 0.0
          %2650 = vadd.xlane.f32.xlu0 %v2649
          %v2651 = vpop.xlane.xlu0 %2650
          %v2652 = vrot.slane %v2651, 4
          %v2653 = vadd.f32 %v2651, %v2652
          %v2654 = vrot.slane %v2653, 2
          %v2655 = vadd.f32 %v2653, %v2654
          %v2656 = vrot.slane %v2655, 1
          %v2657 = vadd.f32 %v2655, %v2656
          %s2658 = vtos %v2657
          %v2659 = vrcp.pop 4.0
          %v2660 = vmul.f32 4.0, %v2659
          %v2661 = vsub.f32 1.0, %v2660
          %v2662 = vmul.f32 %v2659, %v2661
          %v2663 = vadd.f32 %v2659, %v2662
          %vm2664 = vweird.f32 %v2659
          %v2665 = vsel %vm2664, %v2659, %v2663
          %s2666 = vtos %v2665
          %s2667 = smul.f32 %s2658, %s2666
          %s2668 = sadd.f32 %s2548, %s2667
          %s2669 = smul.f32 %s2668, 0.5
          %s2670 = scalar_lea.smem [#allocation3], 0
          %2671 = sst [smem:[%s2670]] %s2669
        $region68: #{simsiam_forward.1} parent=59 // pred_fallthru
          _
        // Predicated region
        $region69: #{simsiam_forward.1} parent=59 // pred_check
          %p2672 = pneg %p255
        $region70: #{simsiam_forward.1} parent=59 // pred_check_branch
          %2674 = sbr.rel (%p2672) target = $region72
        $region71: #{simsiam_forward.1} parent=59 // pred_region
          %2676 = vsyncadd [#allocation4], 0
          %s2678 = sshll.u32 %s10, 4
          %s2679 = int_to_ptr.hbm [resolvable:$true] %s2678
          %2681 = dma.smem_to_hbm [#allocation3], 16, %s2679, [#allocation4]
        $region72: #{simsiam_forward.1} parent=59 // pred_fallthru
          _
        // Predicated region
        $region73: #{simsiam_forward.1} parent=59 // pred_check
          %p2682 = pneg %p255
        $region74: #{simsiam_forward.1} parent=59 // pred_check_branch
          %2684 = sbr.rel (%p2682) target = $region76
        $region75: #{simsiam_forward.1} parent=59 // pred_region
          %2686 = dma.done [#allocation4], 16
        $region76: #{simsiam_forward.1} parent=59 // pred_fallthru
          _
        %2687 = sfence
      $region60: #{simsiam_forward.1} parent=5 // pred_fallthru
        _
      %p2688 = scmp.le.s32.totalorder 2, %s17
      // Predicated region
      $region77: #{simsiam_forward.1} parent=5 // pred_check
        %p2689 = pneg %p2688
      $region78: #{simsiam_forward.1} parent=5 // pred_check_branch
        %2691 = sbr.rel (%p2689) target = $region80
      $region79: #{simsiam_forward.1} parent=5 // pred_region
        %s2692 = ssub.s32 %s17, 2
      $region80: #{simsiam_forward.1} parent=5 // pred_fallthru
        _
    $region6: #{simsiam_forward.1} parent=1 // loop_footer
      %s21 = sadd.s32 1, %s17
    $region7: #{simsiam_forward.1} parent=1 // loop_footer_branch
      %16 = sbr.rel target = $region3
    $region8: #{simsiam_forward.1} parent=1 // loop_exit
      _
    %2693 = vsyncpa [#allocation4], 1
    %s2694 = scalar_lea.sflag [#allocation4], 1
    %2695 = vsyncpa %s2694, 1

</llo_original>
